<compile_context>
chip_gen: v7x
topology: tpu7x:2x2x1
jax: 0.10.0
libtpu: 0.0.40
codegen_flags: <defaults>
</compile_context>

<pallas_src>
import numpy as np
import jax
import jax.numpy as jnp
from jax.experimental import pallas as pl
from jax.experimental.pallas import tpu as pltpu

INF = 100000.0  # _NLM_Layer.INF


# ---------------------------------------------------------------------------
# VMEM / tiling helpers (padding- and generation-aware)
# ---------------------------------------------------------------------------

def _round_up(x, m):
    return ((x + m - 1) // m) * m


def _padded_bytes(shape, itemsize):
    """VMEM bytes of a block after (sublane, lane) padding: last dim pads to 128
    lanes, second-to-last to the dtype's sublane packing (32 // itemsize).
    A (..., 4) f32 block really occupies 32x its logical size."""
    shape = tuple(int(s) for s in shape)
    sub = max(8, 32 // itemsize)
    if len(shape) == 0:
        return 128 * sub * itemsize
    if len(shape) == 1:
        return _round_up(shape[0], 128) * sub * itemsize
    lead = 1
    for s in shape[:-2]:
        lead *= s
    return lead * _round_up(shape[-2], sub) * _round_up(shape[-1], 128) * itemsize


def _vmem_capacity_bytes():
    """Physical VMEM of the current TPU generation (64 MiB v7x, 128 MiB v5e/v6e).
    Falls back to the smallest (v7x) figure if the query is unavailable."""
    try:
        info = pltpu.get_tpu_info()
        cap = int(getattr(info, "vmem_capacity_bytes", 0))
        if cap > 0:
            return cap
    except Exception:
        pass
    return 64 * 1024 * 1024


# ---------------------------------------------------------------------------
# Fused arity-2 (+ arity-1 reduce) Pallas kernel
# ---------------------------------------------------------------------------

def _nlm2_fused_kernel(nobj_ref,
                       x1i_ref, x1n_ref, x2_ref, x2t_ref,
                       w1a_ref, w1b_ref, w1c_ref, w1d_ref, b1_ref,
                       w2_ref, b2_ref,
                       y2_ref, rmin_ref, rmax_ref):
    """Per (batch b, i-row-tile):
       - masked min/max reduce of X2[b, i_tile, :, :] over j (exclude_self diagonal +
         invalid-object masking) -> rmin/rmax outputs (arity-1 reduction, fused here
         so X2 is streamed from HBM exactly once);
       - arity-2 MLP with split-W1 accumulation (no feature concatenation):
         h = X1[i]@W1a + X2[i,j]@W1b + X1[j]@W1c + X2[j,i]@W1d + b1;
       - residual-fused store [X2 | MLP2]."""
    b = pl.program_id(0)
    ti = x1i_ref.shape[1]
    i0 = pl.program_id(1) * ti
    n_obj = nobj_ref[b]

    x2 = x2_ref[0]                                   # (ti, N, P2) f32
    _, N, P2 = x2.shape
    rows = ti * N
    bf16 = jnp.bfloat16
    f32 = jnp.float32

    # ----- arity-1 reduce of X2 over j -----
    # exclude_self: max branch diag -> 0, min branch diag -> 1;
    # mask_invalid_pos (max(i,j) >= num_obj) overrides with -/+INF afterwards.
    i_idx = jax.lax.broadcasted_iota(jnp.int32, x2.shape, 0) + i0
    j_idx = jax.lax.broadcasted_iota(jnp.int32, x2.shape, 1)
    eye = i_idx == j_idx
    invalid = jnp.maximum(i_idx, j_idx) >= n_obj
    rmax_ref[0] = jnp.max(jnp.where(invalid, -INF, jnp.where(eye, 0.0, x2)), axis=1)
    rmin_ref[0] = jnp.min(jnp.where(invalid, INF, jnp.where(eye, 1.0, x2)), axis=1)

    # ----- arity-2 MLP, first layer: split-W1 accumulation (no concat) -----
    # feature row (i,j) = [X1[b,i], X2[b,i,j], X1[b,j], X2[b,j,i]]; each 4-lane term
    # goes straight to the MXU against its own W1 slice and is accumulated in f32.
    h_i = jnp.dot(x1i_ref[0].astype(bf16), w1a_ref[...],
                  preferred_element_type=f32) + b1_ref[...]            # (ti, H)
    h_j = jnp.dot(x1n_ref[0].astype(bf16), w1c_ref[...],
                  preferred_element_type=f32)                          # (N, H)
    h_d = jnp.dot(x2.reshape(rows, P2).astype(bf16), w1b_ref[...],
                  preferred_element_type=f32)                          # (rows, H)
    h_t = jnp.dot(x2t_ref[0], w1d_ref[...],                            # x2t is bf16
                  preferred_element_type=f32)                          # (rows, H)
    H = h_i.shape[-1]
    h = (h_d + h_t).reshape(ti, N, H) + h_i[:, None, :] + h_j[None, :, :]
    h = jax.nn.sigmoid(h)                                              # f32 epilogue

    # ----- second layer -----
    out = jnp.dot(h.reshape(rows, H).astype(bf16), w2_ref[...],
                  preferred_element_type=f32) + b2_ref[...]
    out = jax.nn.sigmoid(out)
    out3 = out.reshape(ti, N, out.shape[-1])

    # ----- residual-fused store: [X2 | MLP2] -----
    # TODO(synk): a lane-dense (ti, N*(P2+O2)) output slab would turn these 8-lane
    # masked stores into dense vst's, but needs a minor-dim reshape whose Mosaic
    # lowering we could not validate here; kept the proven 8-lane block store.
    y2_ref[0] = jnp.concatenate([x2, out3], axis=-1)


def nlm_arity2_fused(X1, X2, num_obj, params2):
    """Returns (Y2, r2_min, r2_max):
       Y2     = concat(X2, MLP2(permute(cat(expand(X1), X2))))   [B,N,N,P2+O2]
       r2_min/max = exclude_self + invalid-masked reduce of X2 over j  [B,N,P2]"""
    B, N, P1 = X1.shape
    P2 = X2.shape[-1]
    w1, b1, w2, b2 = params2
    H, O2 = w1.shape[1], w2.shape[1]
    C = P2 + O2
    assert N % 8 == 0  # TODO(synk): pad the object axis when N is not a multiple of 8
    assert w1.shape[0] == 2 * (P1 + P2)

    bf16 = jnp.bfloat16
    # Split W1 row-wise per feature group [X1_i | X2_ij | X1_j | X2_ji] (bf16 MXU copies).
    w1a = w1[:P1].astype(bf16)
    w1b = w1[P1:P1 + P2].astype(bf16)
    w1c = w1[P1 + P2:2 * P1 + P2].astype(bf16)
    w1d = w1[2 * P1 + P2:].astype(bf16)
    w2b = w2.astype(bf16)

    # Transposed stream X2[b,j,i]: exclusively an MXU operand, so materialize it in
    # bf16 (half the HBM write+read of an f32 transpose) and pre-flatten to
    # (B, N*N, P2) so the kernel uses it as 2-D matmul rows with no in-kernel relayout.
    X2T = jnp.transpose(X2, (0, 2, 1, 3)).astype(bf16).reshape(B, N * N, P2)

    # ---- padding- and generation-aware tile selection ----
    cap = _vmem_capacity_bytes()
    budget = int(0.45 * cap)          # leave headroom for compiler scratch / spills

    def est_bytes(t):
        blocks = (2 * _padded_bytes((1, t, P1), 4)            # x1 (i-tile)
                  + 2 * _padded_bytes((1, N, P1), 4)          # x1 (full row)
                  + 2 * _padded_bytes((1, t, N, P2), 4)       # x2 (direct, f32)
                  + 2 * _padded_bytes((1, t * N, P2), 2)      # x2t (bf16)
                  + 2 * _padded_bytes((1, t, N, C), 4)        # y2 out
                  + 4 * _padded_bytes((1, t, P2), 4))         # rmin/rmax out
        inter = (3 * _padded_bytes((t * N, H), 4)             # h f32 + temporaries
                 + 2 * _padded_bytes((t * N, H), 2)           # bf16 casts
                 + 2 * _padded_bytes((t, N, P2), 4)           # x2 value / masks
                 + 2 * _padded_bytes((t * N, O2), 4))         # out
        return blocks + inter + (64 << 10)                    # weights/bias/iota slack

    cands = [t for t in range(8, N + 1, 8) if N % t == 0]
    fits = [t for t in cands if est_bytes(t) <= budget and t * N <= 4096]
    if not fits:
        fits = [8]
    # Keep >= 2 grid blocks when possible so v7x's two TensorCores both get work.
    multi = [t for t in fits if B * (N // t) >= 2]
    ti = max(multi) if multi else max(fits)

    grid = (B, N // ti)
    vmem_limit = int(min(0.75 * cap, max(32 << 20, 2 * est_bytes(ti))))

    out_shapes = (jax.ShapeDtypeStruct((B, N, N, C), jnp.float32),
                  jax.ShapeDtypeStruct((B, N, P2), jnp.float32),
                  jax.ShapeDtypeStruct((B, N, P2), jnp.float32))

    return pl.pallas_call(
        _nlm2_fused_kernel,
        out_shape=out_shapes,
        grid_spec=pltpu.PrefetchScalarGridSpec(
            num_scalar_prefetch=1,                 # num_obj -> SMEM
            grid=grid,
            in_specs=[
                pl.BlockSpec((1, ti, P1), lambda b, i, nobj: (b, i, 0)),        # X1[b, i-tile]
                pl.BlockSpec((1, N, P1), lambda b, i, nobj: (b, 0, 0)),         # X1[b, :]
                pl.BlockSpec((1, ti, N, P2), lambda b, i, nobj: (b, i, 0, 0)),  # X2[b, i-tile]
                pl.BlockSpec((1, ti * N, P2), lambda b, i, nobj: (b, i, 0)),    # X2T rows (bf16)
                pl.BlockSpec((P1, H), lambda b, i, nobj: (0, 0)),
                pl.BlockSpec((P2, H), lambda b, i, nobj: (0, 0)),
                pl.BlockSpec((P1, H), lambda b, i, nobj: (0, 0)),
                pl.BlockSpec((P2, H), lambda b, i, nobj: (0, 0)),
                pl.BlockSpec((1, H), lambda b, i, nobj: (0, 0)),
                pl.BlockSpec((H, O2), lambda b, i, nobj: (0, 0)),
                pl.BlockSpec((1, O2), lambda b, i, nobj: (0, 0)),
            ],
            out_specs=[
                pl.BlockSpec((1, ti, N, C), lambda b, i, nobj: (b, i, 0, 0)),
                pl.BlockSpec((1, ti, P2), lambda b, i, nobj: (b, i, 0)),
                pl.BlockSpec((1, ti, P2), lambda b, i, nobj: (b, i, 0)),
            ],
        ),
        compiler_params=pltpu.CompilerParams(
            dimension_semantics=("parallel", "parallel"),
            vmem_limit_bytes=vmem_limit),
    )(num_obj.astype(jnp.int32), X1, X1, X2, X2T,
      w1a, w1b, w1c, w1d, b1.reshape(1, H), w2b, b2.reshape(1, O2))


# ---------------------------------------------------------------------------
# _NLM_Layer forward
#   heavy O(N^2) work -> the fused Pallas kernel (single pass over X2);
#   tiny arity-0/1 MLPs (B and B*N rows, 12/16 features) -> plain f32 JAX.
# ---------------------------------------------------------------------------

def _mlp_f32(x, w1, b1, w2, b2):
    hi = jax.lax.Precision.HIGHEST
    h = jax.nn.sigmoid(jnp.dot(x, w1, precision=hi) + b1)
    return jax.nn.sigmoid(jnp.dot(h, w2, precision=hi) + b2)


def nlm_layer_forward(X0, X1, X2, num_obj, params):
    """X0: [B,P0], X1: [B,N,P1], X2: [B,N,N,P2], num_obj: [B] int.
    Returns residual-concatenated outputs for arities 0, 1, 2."""
    B, N, P1 = X1.shape
    P0 = X0.shape[-1]
    n32 = num_obj.astype(jnp.int32)

    # ----- arity 2 (+ fused arity-1 reduce of X2): single Pallas pass over X2 -----
    Y2, r2_min, r2_max = nlm_arity2_fused(X1, X2, n32, params[2])

    # ----- arity-1 reduce of X1 (for the arity-0 features): tiny, plain JAX -----
    # (arity-1 exclude_self mask is all-ones, so only invalid-object masking applies)
    invalid1 = jnp.arange(N, dtype=jnp.int32)[None, :, None] >= n32[:, None, None]
    r1_max = jnp.max(jnp.where(invalid1, -INF, X1), axis=1)
    r1_min = jnp.min(jnp.where(invalid1, INF, X1), axis=1)

    # ----- arity 0 MLP + residual -----
    feat0 = jnp.concatenate([X0, r1_min, r1_max], axis=-1)
    out0 = _mlp_f32(feat0, *params[0])
    Y0 = jnp.concatenate([X0, out0], axis=-1)

    # ----- arity 1 MLP + residual (rows = B*N, Cin = P0+P1+2*P2: trivial) -----
    feat1 = jnp.concatenate([jnp.broadcast_to(X0[:, None, :], (B, N, P0)),
                             X1, r2_min, r2_max], axis=-1)
    out1 = _mlp_f32(feat1, *params[1])
    Y1 = jnp.concatenate([X1, out1], axis=-1)

    return Y0, Y1, Y2


# ---------------------------------------------------------------------------
# Pure-JAX reference (mirrors the PyTorch semantics, f32 HIGHEST) for checking
# ---------------------------------------------------------------------------

def _ref_reduce(X, num_obj, reduce_type):
    arity = X.ndim - 2
    B, N = X.shape[0], X.shape[1]
    P = X.shape[-1]
    if arity == 1:
        mask0 = jnp.ones((1, N, 1), jnp.float32)
    else:
        mask0 = (1.0 - jnp.eye(N, dtype=jnp.float32))[None, :, :, None]
    if reduce_type == 'max':
        Xm = X * mask0
        value = -INF
    else:
        Xm = X * mask0 + (1.0 - mask0)
        value = INF
    if arity == 1:
        t = jnp.arange(N)
    else:
        t = jnp.maximum(jnp.arange(N)[None, :], jnp.arange(N)[:, None])
    idx = jnp.broadcast_to(t[..., None], t.shape + (P,))[None]
    invalid = idx >= num_obj.reshape((B,) + (1,) * (arity + 1))
    Xmi = jnp.where(invalid, value, Xm)
    return jnp.max(Xmi, axis=-2) if reduce_type == 'max' else jnp.min(Xmi, axis=-2)


def _ref_mlp(x, w1, b1, w2, b2):
    h = jax.nn.sigmoid(jnp.dot(x, w1, precision=jax.lax.Precision.HIGHEST) + b1)
    return jax.nn.sigmoid(jnp.dot(h, w2, precision=jax.lax.Precision.HIGHEST) + b2)


def reference_forward(X0, X1, X2, num_obj, params):
    B, N, P1 = X1.shape
    P0 = X0.shape[-1]
    r1_min = _ref_reduce(X1, num_obj, 'min')
    r1_max = _ref_reduce(X1, num_obj, 'max')
    r2_min = _ref_reduce(X2, num_obj, 'min')
    r2_max = _ref_reduce(X2, num_obj, 'max')
    feat0 = jnp.concatenate([X0, r1_min, r1_max], -1)
    feat1 = jnp.concatenate([jnp.broadcast_to(X0[:, None, :], (B, N, P0)),
                             X1, r2_min, r2_max], -1)
    cat2 = jnp.concatenate([jnp.broadcast_to(X1[:, :, None, :], (B, N, N, P1)), X2], -1)
    feat2 = jnp.concatenate([cat2, jnp.transpose(cat2, (0, 2, 1, 3))], -1)
    o0 = _ref_mlp(feat0, *params[0])
    o1 = _ref_mlp(feat1, *params[1])
    o2 = _ref_mlp(feat2, *params[2])
    return (jnp.concatenate([X0, o0], -1),
            jnp.concatenate([X1, o1], -1),
            jnp.concatenate([X2, o2], -1))


# ---------------------------------------------------------------------------
# Deterministic parameter init (shapes from _InferenceMLP.__init__)
# ---------------------------------------------------------------------------

def init_mlp(key, pin, hidden, pout):
    k1, k2, k3, k4 = jax.random.split(key, 4)
    lim1 = 1.0 / np.sqrt(pin)
    lim2 = 1.0 / np.sqrt(hidden)
    w1 = jax.random.uniform(k1, (pin, hidden), jnp.float32, -lim1, lim1)
    b1 = jax.random.uniform(k2, (hidden,), jnp.float32, -lim1, lim1)
    w2 = jax.random.uniform(k3, (hidden, pout), jnp.float32, -lim2, lim2)
    b2 = jax.random.uniform(k4, (pout,), jnp.float32, -lim2, lim2)
    return w1, b1, w2, b2


if __name__ == "__main__":
    key = jax.random.PRNGKey(0)
    B, N = 2, 8
    P0, P1, P2 = 4, 4, 4          # input predicates per arity
    HIDDEN = 16                   # mlp_hidden_features
    OUT = (4, 4, 4)               # out_features per arity

    kx0, kx1, kx2, kp0, kp1, kp2 = jax.random.split(key, 6)
    X0 = jax.random.uniform(kx0, (B, P0), jnp.float32)
    X1 = jax.random.uniform(kx1, (B, N, P1), jnp.float32)
    X2 = jax.random.uniform(kx2, (B, N, N, P2), jnp.float32)
    num_obj = jnp.array([3, 8], dtype=jnp.int32)   # one padded sample

    params = [
        init_mlp(kp0, P0 + 2 * P1, HIDDEN, OUT[0]),        # arity-0 MLP, in=12
        init_mlp(kp1, P0 + P1 + 2 * P2, HIDDEN, OUT[1]),   # arity-1 MLP, in=16
        init_mlp(kp2, 2 * (P1 + P2), HIDDEN, OUT[2]),      # arity-2 MLP, in=16
    ]

    # TODO(synk): nn.BatchNorm1d branch (batchnorm=True) not implemented; this
    # instantiation uses batchnorm=False.

    fwd = jax.jit(nlm_layer_forward)
    Y0, Y1, Y2 = fwd(X0, X1, X2, num_obj, params)
    jax.block_until_ready((Y0, Y1, Y2))

    R0, R1, R2 = reference_forward(X0, X1, X2, num_obj, params)
    Y0n, Y1n, Y2n = map(np.asarray, (Y0, Y1, Y2))
    R0n, R1n, R2n = map(np.asarray, (R0, R1, R2))

    assert Y0n.shape == R0n.shape and Y1n.shape == R1n.shape and Y2n.shape == R2n.shape
    assert np.isfinite(Y0n).all() and np.isfinite(Y1n).all() and np.isfinite(Y2n).all()

    # arity 0: both paths f32 HIGHEST
    assert np.allclose(Y0n, R0n, atol=1e-4, rtol=1e-4)
    # residual channels are exact pass-throughs
    assert np.allclose(Y1n[..., :P1], R1n[..., :P1], atol=1e-6)
    assert np.allclose(Y2n[..., :P2], R2n[..., :P2], atol=1e-6)
    # arity 1: reduces are exact f32 from the kernel, MLP runs in f32 HIGHEST;
    # rows i >= num_obj carry +/-INF sentinels (saturated sigmoids) -> loose full
    # check plus a tight check on the semantically valid rows.
    valid1 = np.arange(N)[None, :] < np.asarray(num_obj)[:, None]
    assert np.allclose(Y1n, R1n, atol=1e-2, rtol=1e-2)
    assert np.abs(Y1n - R1n)[valid1].max() < 1e-3
    # arity 2: bf16 MXU matmuls (all features in [0,1]) vs f32 HIGHEST reference
    assert np.allclose(Y2n, R2n, atol=1e-2, rtol=1e-2)

    print("KERNEL_OK")
</pallas_src>

<mosaic_0001>
module attributes {stable_mosaic.version = 11 : i64} {
  func.func @_nlm2_fused_kernel(%arg0: i32, %arg1: i32, %arg2: memref<2xi32, #tpu.memory_space<smem>>, %arg3: memref<1x8x4xf32, #tpu.memory_space<vmem>>, %arg4: memref<1x8x4xf32, #tpu.memory_space<vmem>>, %arg5: memref<1x8x8x4xf32, #tpu.memory_space<vmem>>, %arg6: memref<1x64x4xbf16, #tpu.memory_space<vmem>>, %arg7: memref<4x16xbf16, #tpu.memory_space<vmem>>, %arg8: memref<4x16xbf16, #tpu.memory_space<vmem>>, %arg9: memref<4x16xbf16, #tpu.memory_space<vmem>>, %arg10: memref<4x16xbf16, #tpu.memory_space<vmem>>, %arg11: memref<1x16xf32, #tpu.memory_space<vmem>>, %arg12: memref<16x4xbf16, #tpu.memory_space<vmem>>, %arg13: memref<1x4xf32, #tpu.memory_space<vmem>>, %arg14: memref<1x8x8x8xf32, #tpu.memory_space<vmem>>, %arg15: memref<1x8x4xf32, #tpu.memory_space<vmem>>, %arg16: memref<1x8x4xf32, #tpu.memory_space<vmem>>) attributes {dimension_semantics = [#tpu.dimension_semantics<parallel>, #tpu.dimension_semantics<parallel>], iteration_bounds = array<i64: 2, 1>, scalar_prefetch = 1 : i64, scratch_operands = 0 : i64, tpu.core_type = #tpu.core_type<tc>, window_params = [{transform_indices = @transform_0, window_bounds = array<i64: 1, 8, 4>}, {transform_indices = @transform_1, window_bounds = array<i64: 1, 8, 4>}, {transform_indices = @transform_2, window_bounds = array<i64: 1, 8, 8, 4>}, {transform_indices = @transform_3, window_bounds = array<i64: 1, 64, 4>}, {pipeline_mode = #tpu.pipeline_mode<synchronous>, transform_indices = @transform_4, window_bounds = array<i64: 4, 16>}, {pipeline_mode = #tpu.pipeline_mode<synchronous>, transform_indices = @transform_5, window_bounds = array<i64: 4, 16>}, {pipeline_mode = #tpu.pipeline_mode<synchronous>, transform_indices = @transform_6, window_bounds = array<i64: 4, 16>}, {pipeline_mode = #tpu.pipeline_mode<synchronous>, transform_indices = @transform_7, window_bounds = array<i64: 4, 16>}, {pipeline_mode = #tpu.pipeline_mode<synchronous>, transform_indices = @transform_8, window_bounds = array<i64: 1, 16>}, {pipeline_mode = #tpu.pipeline_mode<synchronous>, transform_indices = @transform_9, window_bounds = array<i64: 16, 4>}, {pipeline_mode = #tpu.pipeline_mode<synchronous>, transform_indices = @transform_10, window_bounds = array<i64: 1, 4>}, {transform_indices = @transform_11, window_bounds = array<i64: 1, 8, 8, 8>}, {transform_indices = @transform_12, window_bounds = array<i64: 1, 8, 4>}, {transform_indices = @transform_13, window_bounds = array<i64: 1, 8, 4>}]} {
    %c8_i32 = arith.constant 8 : i32
    %0 = arith.muli %arg1, %c8_i32 : i32
    %1 = arith.index_cast %arg0 : i32 to index
    %2 = memref.load %arg2[%1] : memref<2xi32, #tpu.memory_space<smem>>
    %c0 = arith.constant 0 : index
    %c0_0 = arith.constant 0 : index
    %c0_1 = arith.constant 0 : index
    %c0_2 = arith.constant 0 : index
    %3 = vector.load %arg5[%c0, %c0_0, %c0_1, %c0_2] : memref<1x8x8x4xf32, #tpu.memory_space<vmem>>, vector<1x8x8x4xf32>
    %4 = vector.shape_cast %3 : vector<1x8x8x4xf32> to vector<8x8x4xf32>
    %5 = tpu.iota {dimensions = array<i32: 0>} : vector<8x8x4xi32>
    %6 = vector.broadcast %0 : i32 to vector<8x8x4xi32>
    %7 = arith.addi %5, %6 : vector<8x8x4xi32>
    %8 = tpu.iota {dimensions = array<i32: 1>} : vector<8x8x4xi32>
    %9 = arith.cmpi eq, %7, %8 : vector<8x8x4xi32>
    %10 = arith.maxsi %7, %8 : vector<8x8x4xi32>
    %11 = vector.broadcast %2 : i32 to vector<8x8x4xi32>
    %12 = arith.cmpi sge, %10, %11 : vector<8x8x4xi32>
    %cst = arith.constant 0.000000e+00 : f32
    %13 = vector.broadcast %cst : f32 to vector<8x8x4xf32>
    %14 = arith.select %9, %13, %4 : vector<8x8x4xi1>, vector<8x8x4xf32>
    %cst_3 = arith.constant -1.000000e+05 : f32
    %15 = vector.broadcast %cst_3 : f32 to vector<8x8x4xf32>
    %16 = arith.select %12, %15, %14 : vector<8x8x4xi1>, vector<8x8x4xf32>
    %cst_4 = arith.constant dense<0xFF800000> : vector<8x4xf32>
    %17 = vector.multi_reduction <maximumf>, %16, %cst_4 [1] : vector<8x8x4xf32> to vector<8x4xf32>
    %c0_5 = arith.constant 0 : index
    %c0_6 = arith.constant 0 : index
    %c0_7 = arith.constant 0 : index
    %18 = vector.load %arg16[%c0_5, %c0_6, %c0_7] : memref<1x8x4xf32, #tpu.memory_space<vmem>>, vector<1x8x4xf32>
    %19 = vector.shape_cast %18 : vector<1x8x4xf32> to vector<8x4xf32>
    %20 = vector.shape_cast %17 : vector<8x4xf32> to vector<1x8x4xf32>
    tpu.vector_store %arg16[%c0_5, %c0_6, %c0_7], %20 {strides = array<i32>} : memref<1x8x4xf32, #tpu.memory_space<vmem>>, vector<1x8x4xf32>,
    %cst_8 = arith.constant 1.000000e+00 : f32
    %21 = vector.broadcast %cst_8 : f32 to vector<8x8x4xf32>
    %22 = arith.select %9, %21, %4 : vector<8x8x4xi1>, vector<8x8x4xf32>
    %cst_9 = arith.constant 1.000000e+05 : f32
    %23 = vector.broadcast %cst_9 : f32 to vector<8x8x4xf32>
    %24 = arith.select %12, %23, %22 : vector<8x8x4xi1>, vector<8x8x4xf32>
    %cst_10 = arith.constant dense<0x7F800000> : vector<8x4xf32>
    %25 = vector.multi_reduction <minimumf>, %24, %cst_10 [1] : vector<8x8x4xf32> to vector<8x4xf32>
    %c0_11 = arith.constant 0 : index
    %c0_12 = arith.constant 0 : index
    %c0_13 = arith.constant 0 : index
    %26 = vector.load %arg15[%c0_11, %c0_12, %c0_13] : memref<1x8x4xf32, #tpu.memory_space<vmem>>, vector<1x8x4xf32>
    %27 = vector.shape_cast %26 : vector<1x8x4xf32> to vector<8x4xf32>
    %28 = vector.shape_cast %25 : vector<8x4xf32> to vector<1x8x4xf32>
    tpu.vector_store %arg15[%c0_11, %c0_12, %c0_13], %28 {strides = array<i32>} : memref<1x8x4xf32, #tpu.memory_space<vmem>>, vector<1x8x4xf32>,
    %c0_14 = arith.constant 0 : index
    %c0_15 = arith.constant 0 : index
    %c0_16 = arith.constant 0 : index
    %29 = vector.load %arg3[%c0_14, %c0_15, %c0_16] : memref<1x8x4xf32, #tpu.memory_space<vmem>>, vector<1x8x4xf32>
    %30 = vector.shape_cast %29 : vector<1x8x4xf32> to vector<8x4xf32>
    %31 = arith.truncf %30 : vector<8x4xf32> to vector<8x4xbf16>
    %c0_17 = arith.constant 0 : index
    %c0_18 = arith.constant 0 : index
    %32 = vector.load %arg7[%c0_17, %c0_18] : memref<4x16xbf16, #tpu.memory_space<vmem>>, vector<4x16xbf16>
    %cst_19 = arith.constant dense<0.000000e+00> : vector<8x16xf32>
    %33 = tpu.matmul %31, %32, %cst_19 {dimension_numbers = #tpu.dot_dimension_numbers<[1], [0], [0], [1], [0, 0, 1, 1], [], []>} : vector<8x4xbf16>, vector<4x16xbf16>, vector<8x16xf32> -> vector<8x16xf32>
    %c0_20 = arith.constant 0 : index
    %c0_21 = arith.constant 0 : index
    %34 = vector.load %arg11[%c0_20, %c0_21] : memref<1x16xf32, #tpu.memory_space<vmem>>, vector<1x16xf32>
    %35 = vector.broadcast %34 : vector<1x16xf32> to vector<8x16xf32>
    %36 = arith.addf %33, %35 : vector<8x16xf32>
    %c0_22 = arith.constant 0 : index
    %c0_23 = arith.constant 0 : index
    %c0_24 = arith.constant 0 : index
    %37 = vector.load %arg4[%c0_22, %c0_23, %c0_24] : memref<1x8x4xf32, #tpu.memory_space<vmem>>, vector<1x8x4xf32>
    %38 = vector.shape_cast %37 : vector<1x8x4xf32> to vector<8x4xf32>
    %39 = arith.truncf %38 : vector<8x4xf32> to vector<8x4xbf16>
    %c0_25 = arith.constant 0 : index
    %c0_26 = arith.constant 0 : index
    %40 = vector.load %arg9[%c0_25, %c0_26] : memref<4x16xbf16, #tpu.memory_space<vmem>>, vector<4x16xbf16>
    %cst_27 = arith.constant dense<0.000000e+00> : vector<8x16xf32>
    %41 = tpu.matmul %39, %40, %cst_27 {dimension_numbers = #tpu.dot_dimension_numbers<[1], [0], [0], [1], [0, 0, 1, 1], [], []>} : vector<8x4xbf16>, vector<4x16xbf16>, vector<8x16xf32> -> vector<8x16xf32>
    %42 = vector.shape_cast %4 : vector<8x8x4xf32> to vector<64x4xf32>
    %43 = arith.truncf %42 : vector<64x4xf32> to vector<64x4xbf16>
    %c0_28 = arith.constant 0 : index
    %c0_29 = arith.constant 0 : index
    %44 = vector.load %arg8[%c0_28, %c0_29] : memref<4x16xbf16, #tpu.memory_space<vmem>>, vector<4x16xbf16>
    %cst_30 = arith.constant dense<0.000000e+00> : vector<64x16xf32>
    %45 = tpu.matmul %43, %44, %cst_30 {dimension_numbers = #tpu.dot_dimension_numbers<[1], [0], [0], [1], [0, 0, 1, 1], [], []>} : vector<64x4xbf16>, vector<4x16xbf16>, vector<64x16xf32> -> vector<64x16xf32>
    %c0_31 = arith.constant 0 : index
    %c0_32 = arith.constant 0 : index
    %c0_33 = arith.constant 0 : index
    %46 = vector.load %arg6[%c0_31, %c0_32, %c0_33] : memref<1x64x4xbf16, #tpu.memory_space<vmem>>, vector<1x64x4xbf16>
    %47 = vector.shape_cast %46 : vector<1x64x4xbf16> to vector<64x4xbf16>
    %c0_34 = arith.constant 0 : index
    %c0_35 = arith.constant 0 : index
    %48 = vector.load %arg10[%c0_34, %c0_35] : memref<4x16xbf16, #tpu.memory_space<vmem>>, vector<4x16xbf16>
    %cst_36 = arith.constant dense<0.000000e+00> : vector<64x16xf32>
    %49 = tpu.matmul %47, %48, %cst_36 {dimension_numbers = #tpu.dot_dimension_numbers<[1], [0], [0], [1], [0, 0, 1, 1], [], []>} : vector<64x4xbf16>, vector<4x16xbf16>, vector<64x16xf32> -> vector<64x16xf32>
    %50 = arith.addf %45, %49 : vector<64x16xf32>
    %51 = vector.shape_cast %50 : vector<64x16xf32> to vector<8x8x16xf32>
    %52 = vector.shape_cast %36 : vector<8x16xf32> to vector<8x1x16xf32>
    %53 = vector.broadcast %52 : vector<8x1x16xf32> to vector<8x8x16xf32>
    %54 = arith.addf %51, %53 : vector<8x8x16xf32>
    %55 = vector.shape_cast %41 : vector<8x16xf32> to vector<1x8x16xf32>
    %56 = vector.broadcast %55 : vector<1x8x16xf32> to vector<8x8x16xf32>
    %57 = arith.addf %54, %56 : vector<8x8x16xf32>
    %58 = arith.negf %57 : vector<8x8x16xf32>
    %59 = math.exp %58 : vector<8x8x16xf32>
    %cst_37 = arith.constant 1.000000e+00 : f32
    %60 = vector.broadcast %cst_37 : f32 to vector<8x8x16xf32>
    %61 = arith.addf %60, %59 : vector<8x8x16xf32>
    %62 = arith.divf %60, %61 : vector<8x8x16xf32>
    %63 = vector.shape_cast %62 : vector<8x8x16xf32> to vector<64x16xf32>
    %64 = arith.truncf %63 : vector<64x16xf32> to vector<64x16xbf16>
    %c0_38 = arith.constant 0 : index
    %c0_39 = arith.constant 0 : index
    %65 = vector.load %arg12[%c0_38, %c0_39] : memref<16x4xbf16, #tpu.memory_space<vmem>>, vector<16x4xbf16>
    %cst_40 = arith.constant dense<0.000000e+00> : vector<64x4xf32>
    %66 = tpu.matmul %64, %65, %cst_40 {dimension_numbers = #tpu.dot_dimension_numbers<[1], [0], [0], [1], [0, 0, 1, 1], [], []>} : vector<64x16xbf16>, vector<16x4xbf16>, vector<64x4xf32> -> vector<64x4xf32>
    %c0_41 = arith.constant 0 : index
    %c0_42 = arith.constant 0 : index
    %67 = vector.load %arg13[%c0_41, %c0_42] : memref<1x4xf32, #tpu.memory_space<vmem>>, vector<1x4xf32>
    %68 = vector.broadcast %67 : vector<1x4xf32> to vector<64x4xf32>
    %69 = arith.addf %66, %68 : vector<64x4xf32>
    %70 = arith.negf %69 : vector<64x4xf32>
    %71 = math.exp %70 : vector<64x4xf32>
    %cst_43 = arith.constant 1.000000e+00 : f32
    %72 = vector.broadcast %cst_43 : f32 to vector<64x4xf32>
    %73 = arith.addf %72, %71 : vector<64x4xf32>
    %74 = arith.divf %72, %73 : vector<64x4xf32>
    %75 = vector.shape_cast %74 : vector<64x4xf32> to vector<8x8x4xf32>
    %76 = tpu.concatenate %4, %75 in 2 : vector<8x8x4xf32>, vector<8x8x4xf32> -> vector<8x8x8xf32>
    %c0_44 = arith.constant 0 : index
    %c0_45 = arith.constant 0 : index
    %c0_46 = arith.constant 0 : index
    %c0_47 = arith.constant 0 : index
    %77 = vector.load %arg14[%c0_44, %c0_45, %c0_46, %c0_47] : memref<1x8x8x8xf32, #tpu.memory_space<vmem>>, vector<1x8x8x8xf32>
    %78 = vector.shape_cast %77 : vector<1x8x8x8xf32> to vector<8x8x8xf32>
    %79 = vector.shape_cast %76 : vector<8x8x8xf32> to vector<1x8x8x8xf32>
    tpu.vector_store %arg14[%c0_44, %c0_45, %c0_46, %c0_47], %79 {strides = array<i32>} : memref<1x8x8x8xf32, #tpu.memory_space<vmem>>, vector<1x8x8x8xf32>,
    return
  }
  func.func @transform_0(%arg0: i32, %arg1: i32, %arg2: memref<2xi32, #tpu.memory_space<smem>>) -> (i32, i32, i32) {
    %c0_i32 = arith.constant 0 : i32
    %c0_i32_0 = arith.constant 0 : i32
    return %arg0, %arg1, %c0_i32 : i32, i32, i32
  }
  func.func @transform_1(%arg0: i32, %arg1: i32, %arg2: memref<2xi32, #tpu.memory_space<smem>>) -> (i32, i32, i32) {
    %c0_i32 = arith.constant 0 : i32
    %c0_i32_0 = arith.constant 0 : i32
    %c0_i32_1 = arith.constant 0 : i32
    return %arg0, %c0_i32, %c0_i32_0 : i32, i32, i32
  }
  func.func @transform_2(%arg0: i32, %arg1: i32, %arg2: memref<2xi32, #tpu.memory_space<smem>>) -> (i32, i32, i32, i32) {
    %c0_i32 = arith.constant 0 : i32
    %c0_i32_0 = arith.constant 0 : i32
    %c0_i32_1 = arith.constant 0 : i32
    return %arg0, %arg1, %c0_i32, %c0_i32_0 : i32, i32, i32, i32
  }
  func.func @transform_3(%arg0: i32, %arg1: i32, %arg2: memref<2xi32, #tpu.memory_space<smem>>) -> (i32, i32, i32) {
    %c0_i32 = arith.constant 0 : i32
    %c0_i32_0 = arith.constant 0 : i32
    return %arg0, %arg1, %c0_i32 : i32, i32, i32
  }
  func.func @transform_4(%arg0: i32, %arg1: i32, %arg2: memref<2xi32, #tpu.memory_space<smem>>) -> (i32, i32) {
    %c0_i32 = arith.constant 0 : i32
    %c0_i32_0 = arith.constant 0 : i32
    %c0_i32_1 = arith.constant 0 : i32
    return %c0_i32, %c0_i32_0 : i32, i32
  }
  func.func @transform_5(%arg0: i32, %arg1: i32, %arg2: memref<2xi32, #tpu.memory_space<smem>>) -> (i32, i32) {
    %c0_i32 = arith.constant 0 : i32
    %c0_i32_0 = arith.constant 0 : i32
    %c0_i32_1 = arith.constant 0 : i32
    return %c0_i32, %c0_i32_0 : i32, i32
  }
  func.func @transform_6(%arg0: i32, %arg1: i32, %arg2: memref<2xi32, #tpu.memory_space<smem>>) -> (i32, i32) {
    %c0_i32 = arith.constant 0 : i32
    %c0_i32_0 = arith.constant 0 : i32
    %c0_i32_1 = arith.constant 0 : i32
    return %c0_i32, %c0_i32_0 : i32, i32
  }
  func.func @transform_7(%arg0: i32, %arg1: i32, %arg2: memref<2xi32, #tpu.memory_space<smem>>) -> (i32, i32) {
    %c0_i32 = arith.constant 0 : i32
    %c0_i32_0 = arith.constant 0 : i32
    %c0_i32_1 = arith.constant 0 : i32
    return %c0_i32, %c0_i32_0 : i32, i32
  }
  func.func @transform_8(%arg0: i32, %arg1: i32, %arg2: memref<2xi32, #tpu.memory_space<smem>>) -> (i32, i32) {
    %c0_i32 = arith.constant 0 : i32
    %c0_i32_0 = arith.constant 0 : i32
    %c0_i32_1 = arith.constant 0 : i32
    return %c0_i32, %c0_i32_0 : i32, i32
  }
  func.func @transform_9(%arg0: i32, %arg1: i32, %arg2: memref<2xi32, #tpu.memory_space<smem>>) -> (i32, i32) {
    %c0_i32 = arith.constant 0 : i32
    %c0_i32_0 = arith.constant 0 : i32
    %c0_i32_1 = arith.constant 0 : i32
    return %c0_i32, %c0_i32_0 : i32, i32
  }
  func.func @transform_10(%arg0: i32, %arg1: i32, %arg2: memref<2xi32, #tpu.memory_space<smem>>) -> (i32, i32) {
    %c0_i32 = arith.constant 0 : i32
    %c0_i32_0 = arith.constant 0 : i32
    %c0_i32_1 = arith.constant 0 : i32
    return %c0_i32, %c0_i32_0 : i32, i32
  }
  func.func @transform_11(%arg0: i32, %arg1: i32, %arg2: memref<2xi32, #tpu.memory_space<smem>>) -> (i32, i32, i32, i32) {
    %c0_i32 = arith.constant 0 : i32
    %c0_i32_0 = arith.constant 0 : i32
    %c0_i32_1 = arith.constant 0 : i32
    return %arg0, %arg1, %c0_i32, %c0_i32_0 : i32, i32, i32, i32
  }
  func.func @transform_12(%arg0: i32, %arg1: i32, %arg2: memref<2xi32, #tpu.memory_space<smem>>) -> (i32, i32, i32) {
    %c0_i32 = arith.constant 0 : i32
    %c0_i32_0 = arith.constant 0 : i32
    return %arg0, %arg1, %c0_i32 : i32, i32, i32
  }
  func.func @transform_13(%arg0: i32, %arg1: i32, %arg2: memref<2xi32, #tpu.memory_space<smem>>) -> (i32, i32, i32) {
    %c0_i32 = arith.constant 0 : i32
    %c0_i32_0 = arith.constant 0 : i32
    return %arg0, %arg1, %c0_i32 : i32, i32, i32
  }
}

</mosaic_0001>

<llo_original>
// kernel: nlm_layer_forward.1
$region0: #{nlm_layer_forward.1}
  #allocation0 [shape = 'u32[]', space=smem, size = 0x4, offset = 0x4, fixed_abs, tag = 'smem constant byte address 0x4 - core index']
  #allocation1 [shape = 'u32[144,128]{1,0:T(1,128)}', space=vmem, size = 0x12000, scoped, tag = 'internal scratch']
  #allocation2 [shape = 's32[1]{0}', space=sflag, size = 0x4, scoped, tag = 'scoped memory for nlm_layer_forward.1']
  #allocation3 [shape = 'u8[512]{0}', space=smem, size = 0x200, scoped, tag = 'prefetched SMEM operand 0']
  %s0 = inlined_call_operand.vmem [shape: s32[2], index: 0, kind: input, shape index: {}]
  %s1 = inlined_call_operand.vmem [shape: f32[2,8,4], index: 1, kind: input, shape index: {}, may-alias: {1,2}]
  %s2 = inlined_call_operand.vmem [shape: f32[2,8,4], index: 2, kind: input, shape index: {}, may-alias: {1,2}]
  %s3 = inlined_call_operand.vmem [shape: f32[2,8,8,4], index: 3, kind: input, shape index: {}]
  %s4 = inlined_call_operand.vmem [shape: bf16[2,64,4], index: 4, kind: input, shape index: {}]
  %s5 = inlined_call_operand.vmem [shape: bf16[4,16], index: 5, kind: input, shape index: {}]
  %s6 = inlined_call_operand.vmem [shape: bf16[4,16], index: 6, kind: input, shape index: {}]
  %s7 = inlined_call_operand.vmem [shape: bf16[4,16], index: 7, kind: input, shape index: {}]
  %s8 = inlined_call_operand.vmem [shape: bf16[4,16], index: 8, kind: input, shape index: {}]
  %s9 = inlined_call_operand.vmem [shape: f32[1,16], index: 9, kind: input, shape index: {}]
  %s10 = inlined_call_operand.vmem [shape: bf16[16,4], index: 10, kind: input, shape index: {}]
  %s11 = inlined_call_operand.vmem [shape: f32[1,4], index: 11, kind: input, shape index: {}]
  %s12 = inlined_call_operand.hbm [shape: f32[2,8,8,8], index: 12, kind: output, shape index: {0}]
  %s13 = inlined_call_operand.vmem [shape: f32[2,8,4], index: 13, kind: output, shape index: {1}]
  %s14 = inlined_call_operand.vmem [shape: f32[2,8,4], index: 14, kind: output, shape index: {2}]
  %15 = xla_tuple %s12, %s13, %s14
  %s16 = sld [smem:[#allocation0]]
  $region93: #{nlm_layer_forward.1} parent=0
    _
  %s18 = ssub.s32 1, %s16
  %s19 = scalar_select 0, %s18, %s16
  %s20 = sshll.u32 %s0, 4
  %s21 = int_to_ptr.vmem [resolvable:$true] %s20
  %23 = dma.vmem_to_smem %s21, 16, [#allocation3], [#allocation2]
  %24 = dma.done [#allocation2], 16
  %25 = sfence
  $region1: #{nlm_layer_forward.1} parent=0
    #allocation4 [shape = 'u8[65536]{0}', space=vmem, size = 0x10000, scoped, tag = 'output window, operand 0']
    #allocation5 [shape = 's32[2]{0}', space=sflag, size = 0x8, scoped, tag = 'scoped memory for nlm_layer_forward.1']
    %26 = vsyncpa [#allocation5], 0
    %s27 = scalar_lea.sflag [#allocation5], 1
    %28 = vsyncpa %s27, 0
    loop: start=0, step=1, limit=4
    $region2: #{nlm_layer_forward.1} parent=1 // loop_pre_header
      _
    $region3: #{nlm_layer_forward.1} parent=1 // loop_header
      %s30 = sphi 0, %s34
      %p31 = scmp.ge.s32.totalorder %s30, 4
      %s37 = sphi 0, %s49
      %s38 = sphi 0, %s45
      %s39 = sphi 0, %s37
      %s40 = sphi 0, %s38
      %s41 = sphi 0, %s39
      %s42 = sphi 0, %s40
      %s54 = sphi 0, %s56
      %s57 = sphi 0, %s54
      %s58 = sphi 0, %s57
      %s74 = sphi 0, %s58
      %s80 = sphi 0, %s82
      %s83 = sphi 0, %s80
      %s84 = sphi 0, %s83
      %s100 = sphi 0, %s84
      %s108 = sphi 0, %s110
      %s111 = sphi 0, %s108
      %s112 = sphi 0, %s111
      %s128 = sphi 0, %s112
      %s136 = sphi 0, %s138
      %s139 = sphi 0, %s136
      %s140 = sphi 0, %s139
      %s156 = sphi 0, %s140
      %s160 = sphi 0, %s160
      %s162 = sphi 0, %s160
      %s163 = sphi 0, %s162
      %s177 = sphi 0, %s163
      %s181 = sphi 0, %s181
      %s183 = sphi 0, %s181
      %s184 = sphi 0, %s183
      %s198 = sphi 0, %s184
      %s202 = sphi 0, %s202
      %s204 = sphi 0, %s202
      %s205 = sphi 0, %s204
      %s219 = sphi 0, %s205
      %s223 = sphi 0, %s223
      %s225 = sphi 0, %s223
      %s226 = sphi 0, %s225
      %s240 = sphi 0, %s226
      %s244 = sphi 0, %s244
      %s246 = sphi 0, %s244
      %s247 = sphi 0, %s246
      %s261 = sphi 0, %s247
      %s265 = sphi 0, %s265
      %s267 = sphi 0, %s265
      %s268 = sphi 0, %s267
      %s282 = sphi 0, %s268
      %s286 = sphi 0, %s286
      %s288 = sphi 0, %s286
      %s289 = sphi 0, %s288
      %s303 = sphi 0, %s289
      %s311 = sphi 0, %s313
      %s314 = sphi 0, %s311
      %s315 = sphi 0, %s314
      %s331 = sphi 0, %s315
      %s339 = sphi 0, %s341
      %s342 = sphi 0, %s339
      %s343 = sphi 0, %s342
      %s359 = sphi 0, %s343
      %s367 = sphi 0, %s369
      %s370 = sphi 0, %s367
      %s371 = sphi 0, %s370
      %s387 = sphi 0, %s371
    $region4: #{nlm_layer_forward.1} parent=1 // loop_header_branch
      %33 = sbr.rel (%p31) target = $region8
    $region5: #{nlm_layer_forward.1} parent=1 // loop_body
      %s35 = ssub.s32 %s30, 1
      %s36 = ssub.s32 %s30, 2
      %s43 = sadd.s32 1, %s38
      %p44 = scmp.ge.s32.totalorder %s43, 1
      %s45 = scalar_select %p44, 0, %s43
      %s46 = sadd.s32 1, %s37
      %s47 = scalar_select %p44, %s46, %s37
      %p48 = scmp.ge.s32.totalorder %s47, 2
      %s49 = scalar_select %p48, 0, %s47
      %s50 = ssub.s32 %s37, %s49
      %s51 = ssub.s32 %s38, %s45
      %s52 = sor.u32 %s50, %s51
      %p53 = scmp.eq.s32.totalorder %s52, 0
      %s55 = sadd.s32 %s54, 1
      %s56 = scalar_select %p53, %s54, %s55
      %p59 = pneg %p53
      %p60 = scmp.eq.s32.totalorder %s30, 1
      %p61 = por %p59, %p60
      %p62 = scmp.ne.s32.totalorder %s54, %s57
      %p63 = scmp.eq.s32.totalorder %s30, 0
      %p64 = por %p62, %p63
      %p65 = scmp.ne.s32.totalorder %s54, %s57
      %p66 = scmp.eq.s32.totalorder %s35, 1
      %p67 = por %p65, %p66
      %p68 = scmp.ne.s32.totalorder %s57, %s58
      %p69 = scmp.eq.s32.totalorder %s35, 0
      %p70 = por %p68, %p69
      %p71 = scmp.ne.s32.totalorder %s57, %s58
      %p72 = scmp.eq.s32.totalorder %s36, 1
      %p73 = por %p71, %p72
      %p75 = scmp.ne.s32.totalorder %s58, %s74
      %p76 = scmp.eq.s32.totalorder %s36, 0
      %p77 = por %p75, %p76
      %s78 = ssub.s32 %s37, %s49
      %p79 = scmp.eq.s32.totalorder %s78, 0
      %s81 = sadd.s32 %s80, 1
      %s82 = scalar_select %p79, %s80, %s81
      %p85 = pneg %p79
      %p86 = scmp.eq.s32.totalorder %s30, 1
      %p87 = por %p85, %p86
      %p88 = scmp.ne.s32.totalorder %s80, %s83
      %p89 = scmp.eq.s32.totalorder %s30, 0
      %p90 = por %p88, %p89
      %p91 = scmp.ne.s32.totalorder %s80, %s83
      %p92 = scmp.eq.s32.totalorder %s35, 1
      %p93 = por %p91, %p92
      %p94 = scmp.ne.s32.totalorder %s83, %s84
      %p95 = scmp.eq.s32.totalorder %s35, 0
      %p96 = por %p94, %p95
      %p97 = scmp.ne.s32.totalorder %s83, %s84
      %p98 = scmp.eq.s32.totalorder %s36, 1
      %p99 = por %p97, %p98
      %p101 = scmp.ne.s32.totalorder %s84, %s100
      %p102 = scmp.eq.s32.totalorder %s36, 0
      %p103 = por %p101, %p102
      %s104 = ssub.s32 %s37, %s49
      %s105 = ssub.s32 %s38, %s45
      %s106 = sor.u32 %s104, %s105
      %p107 = scmp.eq.s32.totalorder %s106, 0
      %s109 = sadd.s32 %s108, 1
      %s110 = scalar_select %p107, %s108, %s109
      %p113 = pneg %p107
      %p114 = scmp.eq.s32.totalorder %s30, 1
      %p115 = por %p113, %p114
      %p116 = scmp.ne.s32.totalorder %s108, %s111
      %p117 = scmp.eq.s32.totalorder %s30, 0
      %p118 = por %p116, %p117
      %p119 = scmp.ne.s32.totalorder %s108, %s111
      %p120 = scmp.eq.s32.totalorder %s35, 1
      %p121 = por %p119, %p120
      %p122 = scmp.ne.s32.totalorder %s111, %s112
      %p123 = scmp.eq.s32.totalorder %s35, 0
      %p124 = por %p122, %p123
      %p125 = scmp.ne.s32.totalorder %s111, %s112
      %p126 = scmp.eq.s32.totalorder %s36, 1
      %p127 = por %p125, %p126
      %p129 = scmp.ne.s32.totalorder %s112, %s128
      %p130 = scmp.eq.s32.totalorder %s36, 0
      %p131 = por %p129, %p130
      %s132 = ssub.s32 %s37, %s49
      %s133 = ssub.s32 %s38, %s45
      %s134 = sor.u32 %s132, %s133
      %p135 = scmp.eq.s32.totalorder %s134, 0
      %s137 = sadd.s32 %s136, 1
      %s138 = scalar_select %p135, %s136, %s137
      %p141 = pneg %p135
      %p142 = scmp.eq.s32.totalorder %s30, 1
      %p143 = por %p141, %p142
      %p144 = scmp.ne.s32.totalorder %s136, %s139
      %p145 = scmp.eq.s32.totalorder %s30, 0
      %p146 = por %p144, %p145
      %p147 = scmp.ne.s32.totalorder %s136, %s139
      %p148 = scmp.eq.s32.totalorder %s35, 1
      %p149 = por %p147, %p148
      %p150 = scmp.ne.s32.totalorder %s139, %s140
      %p151 = scmp.eq.s32.totalorder %s35, 0
      %p152 = por %p150, %p151
      %p153 = scmp.ne.s32.totalorder %s139, %s140
      %p154 = scmp.eq.s32.totalorder %s36, 1
      %p155 = por %p153, %p154
      %p157 = scmp.ne.s32.totalorder %s140, %s156
      %p158 = scmp.eq.s32.totalorder %s36, 0
      %p159 = por %p157, %p158
      %s161 = sadd.s32 %s160, 1
      %p164 = scmp.eq.s32.totalorder %s30, 1
      %p165 = scmp.ne.s32.totalorder %s160, %s162
      %p166 = scmp.eq.s32.totalorder %s30, 0
      %p167 = por %p165, %p166
      %p168 = scmp.ne.s32.totalorder %s160, %s162
      %p169 = scmp.eq.s32.totalorder %s35, 1
      %p170 = por %p168, %p169
      %p171 = scmp.ne.s32.totalorder %s162, %s163
      %p172 = scmp.eq.s32.totalorder %s35, 0
      %p173 = por %p171, %p172
      %p174 = scmp.ne.s32.totalorder %s162, %s163
      %p175 = scmp.eq.s32.totalorder %s36, 1
      %p176 = por %p174, %p175
      %p178 = scmp.ne.s32.totalorder %s163, %s177
      %p179 = scmp.eq.s32.totalorder %s36, 0
      %p180 = por %p178, %p179
      %s182 = sadd.s32 %s181, 1
      %p185 = scmp.eq.s32.totalorder %s30, 1
      %p186 = scmp.ne.s32.totalorder %s181, %s183
      %p187 = scmp.eq.s32.totalorder %s30, 0
      %p188 = por %p186, %p187
      %p189 = scmp.ne.s32.totalorder %s181, %s183
      %p190 = scmp.eq.s32.totalorder %s35, 1
      %p191 = por %p189, %p190
      %p192 = scmp.ne.s32.totalorder %s183, %s184
      %p193 = scmp.eq.s32.totalorder %s35, 0
      %p194 = por %p192, %p193
      %p195 = scmp.ne.s32.totalorder %s183, %s184
      %p196 = scmp.eq.s32.totalorder %s36, 1
      %p197 = por %p195, %p196
      %p199 = scmp.ne.s32.totalorder %s184, %s198
      %p200 = scmp.eq.s32.totalorder %s36, 0
      %p201 = por %p199, %p200
      %s203 = sadd.s32 %s202, 1
      %p206 = scmp.eq.s32.totalorder %s30, 1
      %p207 = scmp.ne.s32.totalorder %s202, %s204
      %p208 = scmp.eq.s32.totalorder %s30, 0
      %p209 = por %p207, %p208
      %p210 = scmp.ne.s32.totalorder %s202, %s204
      %p211 = scmp.eq.s32.totalorder %s35, 1
      %p212 = por %p210, %p211
      %p213 = scmp.ne.s32.totalorder %s204, %s205
      %p214 = scmp.eq.s32.totalorder %s35, 0
      %p215 = por %p213, %p214
      %p216 = scmp.ne.s32.totalorder %s204, %s205
      %p217 = scmp.eq.s32.totalorder %s36, 1
      %p218 = por %p216, %p217
      %p220 = scmp.ne.s32.totalorder %s205, %s219
      %p221 = scmp.eq.s32.totalorder %s36, 0
      %p222 = por %p220, %p221
      %s224 = sadd.s32 %s223, 1
      %p227 = scmp.eq.s32.totalorder %s30, 1
      %p228 = scmp.ne.s32.totalorder %s223, %s225
      %p229 = scmp.eq.s32.totalorder %s30, 0
      %p230 = por %p228, %p229
      %p231 = scmp.ne.s32.totalorder %s223, %s225
      %p232 = scmp.eq.s32.totalorder %s35, 1
      %p233 = por %p231, %p232
      %p234 = scmp.ne.s32.totalorder %s225, %s226
      %p235 = scmp.eq.s32.totalorder %s35, 0
      %p236 = por %p234, %p235
      %p237 = scmp.ne.s32.totalorder %s225, %s226
      %p238 = scmp.eq.s32.totalorder %s36, 1
      %p239 = por %p237, %p238
      %p241 = scmp.ne.s32.totalorder %s226, %s240
      %p242 = scmp.eq.s32.totalorder %s36, 0
      %p243 = por %p241, %p242
      %s245 = sadd.s32 %s244, 1
      %p248 = scmp.eq.s32.totalorder %s30, 1
      %p249 = scmp.ne.s32.totalorder %s244, %s246
      %p250 = scmp.eq.s32.totalorder %s30, 0
      %p251 = por %p249, %p250
      %p252 = scmp.ne.s32.totalorder %s244, %s246
      %p253 = scmp.eq.s32.totalorder %s35, 1
      %p254 = por %p252, %p253
      %p255 = scmp.ne.s32.totalorder %s246, %s247
      %p256 = scmp.eq.s32.totalorder %s35, 0
      %p257 = por %p255, %p256
      %p258 = scmp.ne.s32.totalorder %s246, %s247
      %p259 = scmp.eq.s32.totalorder %s36, 1
      %p260 = por %p258, %p259
      %p262 = scmp.ne.s32.totalorder %s247, %s261
      %p263 = scmp.eq.s32.totalorder %s36, 0
      %p264 = por %p262, %p263
      %s266 = sadd.s32 %s265, 1
      %p269 = scmp.eq.s32.totalorder %s30, 1
      %p270 = scmp.ne.s32.totalorder %s265, %s267
      %p271 = scmp.eq.s32.totalorder %s30, 0
      %p272 = por %p270, %p271
      %p273 = scmp.ne.s32.totalorder %s265, %s267
      %p274 = scmp.eq.s32.totalorder %s35, 1
      %p275 = por %p273, %p274
      %p276 = scmp.ne.s32.totalorder %s267, %s268
      %p277 = scmp.eq.s32.totalorder %s35, 0
      %p278 = por %p276, %p277
      %p279 = scmp.ne.s32.totalorder %s267, %s268
      %p280 = scmp.eq.s32.totalorder %s36, 1
      %p281 = por %p279, %p280
      %p283 = scmp.ne.s32.totalorder %s268, %s282
      %p284 = scmp.eq.s32.totalorder %s36, 0
      %p285 = por %p283, %p284
      %s287 = sadd.s32 %s286, 1
      %p290 = scmp.eq.s32.totalorder %s30, 1
      %p291 = scmp.ne.s32.totalorder %s286, %s288
      %p292 = scmp.eq.s32.totalorder %s30, 0
      %p293 = por %p291, %p292
      %p294 = scmp.ne.s32.totalorder %s286, %s288
      %p295 = scmp.eq.s32.totalorder %s35, 1
      %p296 = por %p294, %p295
      %p297 = scmp.ne.s32.totalorder %s288, %s289
      %p298 = scmp.eq.s32.totalorder %s35, 0
      %p299 = por %p297, %p298
      %p300 = scmp.ne.s32.totalorder %s288, %s289
      %p301 = scmp.eq.s32.totalorder %s36, 1
      %p302 = por %p300, %p301
      %p304 = scmp.ne.s32.totalorder %s289, %s303
      %p305 = scmp.eq.s32.totalorder %s36, 0
      %p306 = por %p304, %p305
      %s307 = ssub.s32 %s37, %s49
      %s308 = ssub.s32 %s38, %s45
      %s309 = sor.u32 %s307, %s308
      %p310 = scmp.eq.s32.totalorder %s309, 0
      %s312 = sadd.s32 %s311, 1
      %s313 = scalar_select %p310, %s311, %s312
      %p316 = pneg %p310
      %p317 = scmp.eq.s32.totalorder %s30, 1
      %p318 = por %p316, %p317
      %p319 = scmp.ne.s32.totalorder %s311, %s314
      %p320 = scmp.eq.s32.totalorder %s30, 0
      %p321 = por %p319, %p320
      %p322 = scmp.ne.s32.totalorder %s311, %s314
      %p323 = scmp.eq.s32.totalorder %s35, 1
      %p324 = por %p322, %p323
      %p325 = scmp.ne.s32.totalorder %s314, %s315
      %p326 = scmp.eq.s32.totalorder %s35, 0
      %p327 = por %p325, %p326
      %p328 = scmp.ne.s32.totalorder %s314, %s315
      %p329 = scmp.eq.s32.totalorder %s36, 1
      %p330 = por %p328, %p329
      %p332 = scmp.ne.s32.totalorder %s315, %s331
      %p333 = scmp.eq.s32.totalorder %s36, 0
      %p334 = por %p332, %p333
      %s335 = ssub.s32 %s37, %s49
      %s336 = ssub.s32 %s38, %s45
      %s337 = sor.u32 %s335, %s336
      %p338 = scmp.eq.s32.totalorder %s337, 0
      %s340 = sadd.s32 %s339, 1
      %s341 = scalar_select %p338, %s339, %s340
      %p344 = pneg %p338
      %p345 = scmp.eq.s32.totalorder %s30, 1
      %p346 = por %p344, %p345
      %p347 = scmp.ne.s32.totalorder %s339, %s342
      %p348 = scmp.eq.s32.totalorder %s30, 0
      %p349 = por %p347, %p348
      %p350 = scmp.ne.s32.totalorder %s339, %s342
      %p351 = scmp.eq.s32.totalorder %s35, 1
      %p352 = por %p350, %p351
      %p353 = scmp.ne.s32.totalorder %s342, %s343
      %p354 = scmp.eq.s32.totalorder %s35, 0
      %p355 = por %p353, %p354
      %p356 = scmp.ne.s32.totalorder %s342, %s343
      %p357 = scmp.eq.s32.totalorder %s36, 1
      %p358 = por %p356, %p357
      %p360 = scmp.ne.s32.totalorder %s343, %s359
      %p361 = scmp.eq.s32.totalorder %s36, 0
      %p362 = por %p360, %p361
      %s363 = ssub.s32 %s37, %s49
      %s364 = ssub.s32 %s38, %s45
      %s365 = sor.u32 %s363, %s364
      %p366 = scmp.eq.s32.totalorder %s365, 0
      %s368 = sadd.s32 %s367, 1
      %s369 = scalar_select %p366, %s367, %s368
      %p372 = pneg %p366
      %p373 = scmp.eq.s32.totalorder %s30, 1
      %p374 = por %p372, %p373
      %p375 = scmp.ne.s32.totalorder %s367, %s370
      %p376 = scmp.eq.s32.totalorder %s30, 0
      %p377 = por %p375, %p376
      %p378 = scmp.ne.s32.totalorder %s367, %s370
      %p379 = scmp.eq.s32.totalorder %s35, 1
      %p380 = por %p378, %p379
      %p381 = scmp.ne.s32.totalorder %s370, %s371
      %p382 = scmp.eq.s32.totalorder %s35, 0
      %p383 = por %p381, %p382
      %p384 = scmp.ne.s32.totalorder %s370, %s371
      %p385 = scmp.eq.s32.totalorder %s36, 1
      %p386 = por %p384, %p385
      %p388 = scmp.ne.s32.totalorder %s371, %s387
      %p389 = scmp.eq.s32.totalorder %s36, 0
      %p390 = por %p388, %p389
      %p391 = scmp.le.s32.totalorder 1, %s30
      %p392 = scmp.lt.s32.totalorder %s30, 3
      %p393 = pnand %p391, %p392
      %p394 = pneg %p393
      // Predicated region
      $region9: #{nlm_layer_forward.1} parent=5 // pred_check
        _
      $region10: #{nlm_layer_forward.1} parent=5 // pred_check_branch
        %396 = sbr.rel (%p393) target = $region12
      $region11: #{nlm_layer_forward.1} parent=5 // pred_region
        %s397 = ssub.s32 %s30, 1
        // Predicated region
        $region13: #{nlm_layer_forward.1} parent=11 // pred_check
          %p398 = pneg %p173
        $region14: #{nlm_layer_forward.1} parent=11 // pred_check_branch
          %400 = sbr.rel (%p398) target = $region16
        $region15: #{nlm_layer_forward.1} parent=11 // pred_region
          _
        $region16: #{nlm_layer_forward.1} parent=11 // pred_fallthru
          _
        // Predicated region
        $region17: #{nlm_layer_forward.1} parent=11 // pred_check
          %p401 = pneg %p194
        $region18: #{nlm_layer_forward.1} parent=11 // pred_check_branch
          %403 = sbr.rel (%p401) target = $region20
        $region19: #{nlm_layer_forward.1} parent=11 // pred_region
          _
        $region20: #{nlm_layer_forward.1} parent=11 // pred_fallthru
          _
        // Predicated region
        $region21: #{nlm_layer_forward.1} parent=11 // pred_check
          %p404 = pneg %p215
        $region22: #{nlm_layer_forward.1} parent=11 // pred_check_branch
          %406 = sbr.rel (%p404) target = $region24
        $region23: #{nlm_layer_forward.1} parent=11 // pred_region
          _
        $region24: #{nlm_layer_forward.1} parent=11 // pred_fallthru
          _
        // Predicated region
        $region25: #{nlm_layer_forward.1} parent=11 // pred_check
          %p407 = pneg %p236
        $region26: #{nlm_layer_forward.1} parent=11 // pred_check_branch
          %409 = sbr.rel (%p407) target = $region28
        $region27: #{nlm_layer_forward.1} parent=11 // pred_region
          _
        $region28: #{nlm_layer_forward.1} parent=11 // pred_fallthru
          _
        // Predicated region
        $region29: #{nlm_layer_forward.1} parent=11 // pred_check
          %p410 = pneg %p257
        $region30: #{nlm_layer_forward.1} parent=11 // pred_check_branch
          %412 = sbr.rel (%p410) target = $region32
        $region31: #{nlm_layer_forward.1} parent=11 // pred_region
          _
        $region32: #{nlm_layer_forward.1} parent=11 // pred_fallthru
          _
        // Predicated region
        $region33: #{nlm_layer_forward.1} parent=11 // pred_check
          %p413 = pneg %p278
        $region34: #{nlm_layer_forward.1} parent=11 // pred_check_branch
          %415 = sbr.rel (%p413) target = $region36
        $region35: #{nlm_layer_forward.1} parent=11 // pred_region
          _
        $region36: #{nlm_layer_forward.1} parent=11 // pred_fallthru
          _
        // Predicated region
        $region37: #{nlm_layer_forward.1} parent=11 // pred_check
          %p416 = pneg %p299
        $region38: #{nlm_layer_forward.1} parent=11 // pred_check_branch
          %418 = sbr.rel (%p416) target = $region40
        $region39: #{nlm_layer_forward.1} parent=11 // pred_region
          _
        $region40: #{nlm_layer_forward.1} parent=11 // pred_fallthru
          _
      $region12: #{nlm_layer_forward.1} parent=5 // pred_fallthru
        _
      %p419 = scmp.lt.s32.totalorder %s30, 2
      // Predicated region
      $region41: #{nlm_layer_forward.1} parent=5 // pred_check
        %p420 = pneg %p419
      $region42: #{nlm_layer_forward.1} parent=5 // pred_check_branch
        %422 = sbr.rel (%p420) target = $region44
      $region43: #{nlm_layer_forward.1} parent=5 // pred_region
        // Predicated region
        $region45: #{nlm_layer_forward.1} parent=43 // pred_check
          %p423 = pneg %p64
        $region46: #{nlm_layer_forward.1} parent=43 // pred_check_branch
          %425 = sbr.rel (%p423) target = $region48
        $region47: #{nlm_layer_forward.1} parent=43 // pred_region
          %p426 = scmp.lt.s32.totalorder %s37, 1
          %s427 = scalar_select %p426, %s37, 1
          %p428 = scmp.lt.s32.totalorder %s38, 0
          %s429 = scalar_select %p428, %s38, 0
          %s430 = sadd.s32 %s429, %s427
          %s431 = smul.addr %s430, 8
          %s432 = scalar_lea.vmem %s1, %s431
        $region48: #{nlm_layer_forward.1} parent=43 // pred_fallthru
          _
        // Predicated region
        $region49: #{nlm_layer_forward.1} parent=43 // pred_check
          %p433 = pneg %p90
        $region50: #{nlm_layer_forward.1} parent=43 // pred_check_branch
          %435 = sbr.rel (%p433) target = $region52
        $region51: #{nlm_layer_forward.1} parent=43 // pred_region
          %p436 = scmp.lt.s32.totalorder %s37, 1
          %s437 = scalar_select %p436, %s37, 1
          %s438 = smul.addr %s437, 8
          %s439 = scalar_lea.vmem %s2, %s438
        $region52: #{nlm_layer_forward.1} parent=43 // pred_fallthru
          _
        // Predicated region
        $region53: #{nlm_layer_forward.1} parent=43 // pred_check
          %p440 = pneg %p118
        $region54: #{nlm_layer_forward.1} parent=43 // pred_check_branch
          %442 = sbr.rel (%p440) target = $region56
        $region55: #{nlm_layer_forward.1} parent=43 // pred_region
          %s443 = smul.u32 8, %s38
          %p444 = scmp.lt.s32.totalorder %s37, 1
          %s445 = scalar_select %p444, %s37, 1
          %p446 = scmp.lt.s32.totalorder %s443, 7
          %s447 = scalar_select %p446, %s443, 7
          %s448 = smul.addr %s445, 8
          %s449 = sadd.s32 %s447, %s448
          %s450 = smul.addr %s449, 8
          %s451 = scalar_lea.vmem %s3, %s450
          %s452 = smul.u32 8, %s38
        $region56: #{nlm_layer_forward.1} parent=43 // pred_fallthru
          _
        // Predicated region
        $region57: #{nlm_layer_forward.1} parent=43 // pred_check
          %p453 = pneg %p146
        $region58: #{nlm_layer_forward.1} parent=43 // pred_check_branch
          %455 = sbr.rel (%p453) target = $region60
        $region59: #{nlm_layer_forward.1} parent=43 // pred_region
          %s456 = smul.u32 8, %s38
          %p457 = scmp.lt.s32.totalorder %s37, 1
          %s458 = scalar_select %p457, %s37, 1
          %p459 = scmp.lt.s32.totalorder %s456, 7
          %s460 = scalar_select %p459, %s456, 7
          %s461 = smul.addr %s458, 8
          %s462 = sadd.s32 %s460, %s461
          %s463 = smul.addr %s462, 4
          %s464 = scalar_lea.vmem %s4, %s463
          %s465 = smul.u32 8, %s38
        $region60: #{nlm_layer_forward.1} parent=43 // pred_fallthru
          _
      $region44: #{nlm_layer_forward.1} parent=5 // pred_fallthru
        _
      %p466 = scmp.le.s32.totalorder 1, %s30
      %p467 = scmp.lt.s32.totalorder %s30, 3
      %p468 = pnand %p466, %p467
      %p469 = pneg %p468
      // Predicated region
      $region61: #{nlm_layer_forward.1} parent=5 // pred_check
        _
      $region62: #{nlm_layer_forward.1} parent=5 // pred_check_branch
        %471 = sbr.rel (%p468) target = $region64
      $region63: #{nlm_layer_forward.1} parent=5 // pred_region
        %s472 = ssub.s32 %s30, 1
        %p473 = scmp.lt.s32.totalorder %s39, 1
        %s474 = scalar_select %p473, %s39, 1
        %p475 = scmp.lt.s32.totalorder %s40, 0
        %s476 = scalar_select %p475, %s40, 0
        %s477 = sadd.s32 %s476, %s474
        %s478 = smul.addr %s477, 8
        %s479 = scalar_lea.vmem %s1, %s478
        %p480 = pneg %p70
        %p481 = pneg %p67
        %p482 = scmp.lt.s32.totalorder %s39, 1
        %s483 = scalar_select %p482, %s39, 1
        %s484 = smul.addr %s483, 8
        %s485 = scalar_lea.vmem %s2, %s484
        %p486 = pneg %p96
        %p487 = pneg %p93
        %s488 = smul.u32 8, %s40
        %p489 = scmp.lt.s32.totalorder %s39, 1
        %s490 = scalar_select %p489, %s39, 1
        %p491 = scmp.lt.s32.totalorder %s488, 7
        %s492 = scalar_select %p491, %s488, 7
        %s493 = smul.addr %s490, 8
        %s494 = sadd.s32 %s492, %s493
        %s495 = smul.addr %s494, 8
        %s496 = scalar_lea.vmem %s3, %s495
        %p497 = pneg %p124
        %p498 = pneg %p121
        %s499 = smul.u32 8, %s40
        %p500 = scmp.lt.s32.totalorder %s39, 1
        %s501 = scalar_select %p500, %s39, 1
        %p502 = scmp.lt.s32.totalorder %s499, 7
        %s503 = scalar_select %p502, %s499, 7
        %s504 = smul.addr %s501, 8
        %s505 = sadd.s32 %s503, %s504
        %s506 = smul.addr %s505, 4
        %s507 = scalar_lea.vmem %s4, %s506
        %p508 = pneg %p152
        %p509 = pneg %p149
        %p510 = pneg %p173
        %p511 = pneg %p170
        %p512 = pneg %p194
        %p513 = pneg %p191
        %p514 = pneg %p215
        %p515 = pneg %p212
        %p516 = pneg %p236
        %p517 = pneg %p233
        %p518 = pneg %p257
        %p519 = pneg %p254
        %p520 = pneg %p278
        %p521 = pneg %p275
        %p522 = pneg %p299
        %p523 = pneg %p296
        %p524 = pneg %p327
        %p525 = pneg %p324
        %s526 = sand.u32 %s314, 1
        %s527 = scalar_lea.sflag [#allocation5], %s526
        %s528 = sand.u32 %s314, 1
        %s529 = smul.addr %s528, 64
        %s530 = scalar_lea.vmem [#allocation4], %s529
        %p531 = pneg %p355
        %p532 = pneg %p352
        %p533 = scmp.lt.s32.totalorder %s39, 1
        %s534 = scalar_select %p533, %s39, 1
        %p535 = scmp.lt.s32.totalorder %s40, 0
        %s536 = scalar_select %p535, %s40, 0
        %s537 = sadd.s32 %s536, %s534
        %s538 = smul.addr %s537, 8
        %s539 = scalar_lea.vmem %s13, %s538
        %p540 = pneg %p383
        %p541 = pneg %p380
        %p542 = scmp.lt.s32.totalorder %s39, 1
        %s543 = scalar_select %p542, %s39, 1
        %p544 = scmp.lt.s32.totalorder %s40, 0
        %s545 = scalar_select %p544, %s40, 0
        %s546 = sadd.s32 %s545, %s543
        %s547 = smul.addr %s546, 8
        %s548 = scalar_lea.vmem %s14, %s547
        %p549 = scmp.lt.s32.totalorder %s39, 1
        %s550 = scalar_select %p549, %s39, 1
        %p551 = scmp.lt.s32.totalorder %s40, 0
        %s552 = scalar_select %p551, %s40, 0
        %s553 = sadd.s32 %s552, %s550
        %s554 = smul.addr %s553, 8
        %s555 = scalar_lea.vmem %s1, %s554
        %p556 = scmp.lt.s32.totalorder %s39, 1
        %s557 = scalar_select %p556, %s39, 1
        %s558 = smul.addr %s557, 8
        %s559 = scalar_lea.vmem %s2, %s558
        %s560 = smul.u32 8, %s40
        %p561 = scmp.lt.s32.totalorder %s39, 1
        %s562 = scalar_select %p561, %s39, 1
        %p563 = scmp.lt.s32.totalorder %s560, 7
        %s564 = scalar_select %p563, %s560, 7
        %s565 = smul.addr %s562, 8
        %s566 = sadd.s32 %s564, %s565
        %s567 = smul.addr %s566, 8
        %s568 = scalar_lea.vmem %s3, %s567
        %s569 = smul.u32 8, %s40
        %s570 = smul.u32 8, %s40
        %p571 = scmp.lt.s32.totalorder %s39, 1
        %s572 = scalar_select %p571, %s39, 1
        %p573 = scmp.lt.s32.totalorder %s570, 7
        %s574 = scalar_select %p573, %s570, 7
        %s575 = smul.addr %s572, 8
        %s576 = sadd.s32 %s574, %s575
        %s577 = smul.addr %s576, 4
        %s578 = scalar_lea.vmem %s4, %s577
        %s579 = smul.u32 8, %s40
        %s580 = smul.u32 8, %s40
        %p581 = scmp.lt.s32.totalorder %s39, 1
        %s582 = scalar_select %p581, %s39, 1
        %p583 = scmp.lt.s32.totalorder %s40, 0
        %s584 = scalar_select %p583, %s40, 0
        %s585 = sadd.s32 %s584, %s582
        %s586 = smul.addr %s585, 8
        %s587 = scalar_lea.vmem %s13, %s586
        %p588 = scmp.lt.s32.totalorder %s39, 1
        %s589 = scalar_select %p588, %s39, 1
        %p590 = scmp.lt.s32.totalorder %s40, 0
        %s591 = scalar_select %p590, %s40, 0
        %s592 = sadd.s32 %s591, %s589
        %s593 = smul.addr %s592, 8
        %s594 = scalar_lea.vmem %s14, %s593
        %s596 = smul.u32 %s40, 8
        %s597 = sld [smem:[#allocation3 + %s39]]
        %v598 = vld [vmem:[%s568] sm:$0xff]
        %v599 = vld [vmem:[%s568 + $0x8] sm:$0xff]
        %v600 = vld [vmem:[%s568 + $0x10] sm:$0xff]
        %v601 = vld [vmem:[%s568 + $0x18] sm:$0xff]
        %v602 = vld [vmem:[%s568 + $0x20] sm:$0xff]
        %v603 = vld [vmem:[%s568 + $0x28] sm:$0xff]
        %v604 = vld [vmem:[%s568 + $0x30] sm:$0xff]
        %v605 = vld [vmem:[%s568 + $0x38] sm:$0xff]
        %v606 = vstv %s596
        %v607 = vadd.s32 %v606, 1
        %v608 = vadd.s32 %v606, 2
        %v609 = vadd.s32 %v606, 3
        %v610 = vadd.s32 %v606, 4
        %v611 = vadd.s32 %v606, 5
        %v612 = vadd.s32 %v606, 6
        %v613 = vadd.s32 %v606, 7
        %v614 = vlaneseq
        %v615 = vshrl.u32 %v614, 7
        %vm616 = vcmp.eq.s32.totalorder %v606, %v615
        %vm617 = vcmp.eq.s32.totalorder %v607, %v615
        %vm618 = vcmp.eq.s32.totalorder %v608, %v615
        %vm619 = vcmp.eq.s32.totalorder %v609, %v615
        %vm620 = vcmp.eq.s32.totalorder %v610, %v615
        %vm621 = vcmp.eq.s32.totalorder %v611, %v615
        %vm622 = vcmp.eq.s32.totalorder %v612, %v615
        %vm623 = vcmp.eq.s32.totalorder %v613, %v615
        %vm624 = vcmp.gt.s32.totalorder %v606, %v615
        %v625 = vsel %vm624, %v606, %v615
        %vm626 = vcmp.gt.s32.totalorder %v607, %v615
        %v627 = vsel %vm626, %v607, %v615
        %vm628 = vcmp.gt.s32.totalorder %v608, %v615
        %v629 = vsel %vm628, %v608, %v615
        %vm630 = vcmp.gt.s32.totalorder %v609, %v615
        %v631 = vsel %vm630, %v609, %v615
        %vm632 = vcmp.gt.s32.totalorder %v610, %v615
        %v633 = vsel %vm632, %v610, %v615
        %vm634 = vcmp.gt.s32.totalorder %v611, %v615
        %v635 = vsel %vm634, %v611, %v615
        %vm636 = vcmp.gt.s32.totalorder %v612, %v615
        %v637 = vsel %vm636, %v612, %v615
        %vm638 = vcmp.gt.s32.totalorder %v613, %v615
        %v639 = vsel %vm638, %v613, %v615
        %v640 = vstv %s597
        %vm641 = vcmp.ge.s32.totalorder %v625, %v640
        %vm642 = vcmp.ge.s32.totalorder %v627, %v640
        %vm643 = vcmp.ge.s32.totalorder %v629, %v640
        %vm644 = vcmp.ge.s32.totalorder %v631, %v640
        %vm645 = vcmp.ge.s32.totalorder %v633, %v640
        %vm646 = vcmp.ge.s32.totalorder %v635, %v640
        %vm647 = vcmp.ge.s32.totalorder %v637, %v640
        %vm648 = vcmp.ge.s32.totalorder %v639, %v640
        %v649 = vsel %vm616, 0.0, %v598
        %v650 = vsel %vm617, 0.0, %v599
        %v651 = vsel %vm618, 0.0, %v600
        %v652 = vsel %vm619, 0.0, %v601
        %v653 = vsel %vm620, 0.0, %v602
        %v654 = vsel %vm621, 0.0, %v603
        %v655 = vsel %vm622, 0.0, %v604
        %v656 = vsel %vm623, 0.0, %v605
        %v657 = vsel %vm641, -100000.0, %v649
        %v658 = vsel %vm642, -100000.0, %v650
        %v659 = vsel %vm643, -100000.0, %v651
        %v660 = vsel %vm644, -100000.0, %v652
        %v661 = vsel %vm645, -100000.0, %v653
        %v662 = vsel %vm646, -100000.0, %v654
        %v663 = vsel %vm647, -100000.0, %v655
        %v664 = vsel %vm648, -100000.0, %v656
        %vm665 = vcmask 31744
        %v666 = vsel %vm665, %v657, -inf
        %v667 = vrot.slane %v666, 4
        %v668 = vmax.f32 %v666, %v667
        %v669 = vrot.slane %v668, 2
        %v670 = vmax.f32 %v668, %v669
        %v671 = vrot.slane %v670, 1
        %v672 = vmax.f32 %v670, %v671
        %v673 = vsel %vm665, %v658, -inf
        %v674 = vrot.slane %v673, 4
        %v675 = vmax.f32 %v673, %v674
        %v676 = vrot.slane %v675, 2
        %v677 = vmax.f32 %v675, %v676
        %v678 = vrot.slane %v677, 1
        %v679 = vmax.f32 %v677, %v678
        %v680 = vsel %vm665, %v659, -inf
        %v681 = vrot.slane %v680, 4
        %v682 = vmax.f32 %v680, %v681
        %v683 = vrot.slane %v682, 2
        %v684 = vmax.f32 %v682, %v683
        %v685 = vrot.slane %v684, 1
        %v686 = vmax.f32 %v684, %v685
        %v687 = vsel %vm665, %v660, -inf
        %v688 = vrot.slane %v687, 4
        %v689 = vmax.f32 %v687, %v688
        %v690 = vrot.slane %v689, 2
        %v691 = vmax.f32 %v689, %v690
        %v692 = vrot.slane %v691, 1
        %v693 = vmax.f32 %v691, %v692
        %v694 = vsel %vm665, %v661, -inf
        %v695 = vrot.slane %v694, 4
        %v696 = vmax.f32 %v694, %v695
        %v697 = vrot.slane %v696, 2
        %v698 = vmax.f32 %v696, %v697
        %v699 = vrot.slane %v698, 1
        %v700 = vmax.f32 %v698, %v699
        %v701 = vsel %vm665, %v662, -inf
        %v702 = vrot.slane %v701, 4
        %v703 = vmax.f32 %v701, %v702
        %v704 = vrot.slane %v703, 2
        %v705 = vmax.f32 %v703, %v704
        %v706 = vrot.slane %v705, 1
        %v707 = vmax.f32 %v705, %v706
        %v708 = vsel %vm665, %v663, -inf
        %v709 = vrot.slane %v708, 4
        %v710 = vmax.f32 %v708, %v709
        %v711 = vrot.slane %v710, 2
        %v712 = vmax.f32 %v710, %v711
        %v713 = vrot.slane %v712, 1
        %v714 = vmax.f32 %v712, %v713
        %v715 = vsel %vm665, %v664, -inf
        %v716 = vrot.slane %v715, 4
        %v717 = vmax.f32 %v715, %v716
        %v718 = vrot.slane %v717, 2
        %v719 = vmax.f32 %v717, %v718
        %v720 = vrot.slane %v719, 1
        %v721 = vmax.f32 %v719, %v720
        %vm730 = vcmask 1041409
        %v731 = vsel %vm730, %v679, %v672
        %vm732 = vcmask 1042434
        %v733 = vsel %vm732, %v686, %v731
        %vm734 = vcmask 1043459
        %v735 = vsel %vm734, %v693, %v733
        %vm736 = vcmask 1044484
        %v737 = vsel %vm736, %v700, %v735
        %vm738 = vcmask 1045509
        %v739 = vsel %vm738, %v707, %v737
        %vm740 = vcmask 1046534
        %v741 = vsel %vm740, %v714, %v739
        %vm742 = vcmask 1047559
        %v743 = vsel %vm742, %v721, %v741
        %745 = vst.msk [vmem:[%s594] sm:$0xff] %vm665, %v743
        %v746 = vsel %vm616, 1.0, %v598
        %v747 = vsel %vm617, 1.0, %v599
        %v748 = vsel %vm618, 1.0, %v600
        %v749 = vsel %vm619, 1.0, %v601
        %v750 = vsel %vm620, 1.0, %v602
        %v751 = vsel %vm621, 1.0, %v603
        %v752 = vsel %vm622, 1.0, %v604
        %v753 = vsel %vm623, 1.0, %v605
        %v754 = vsel %vm641, 100000.0, %v746
        %v755 = vsel %vm642, 100000.0, %v747
        %v756 = vsel %vm643, 100000.0, %v748
        %v757 = vsel %vm644, 100000.0, %v749
        %v758 = vsel %vm645, 100000.0, %v750
        %v759 = vsel %vm646, 100000.0, %v751
        %v760 = vsel %vm647, 100000.0, %v752
        %v761 = vsel %vm648, 100000.0, %v753
        %v762 = vsel %vm665, %v754, inf
        %v763 = vrot.slane %v762, 4
        %v764 = vmin.f32 %v762, %v763
        %v765 = vrot.slane %v764, 2
        %v766 = vmin.f32 %v764, %v765
        %v767 = vrot.slane %v766, 1
        %v768 = vmin.f32 %v766, %v767
        %v769 = vsel %vm665, %v755, inf
        %v770 = vrot.slane %v769, 4
        %v771 = vmin.f32 %v769, %v770
        %v772 = vrot.slane %v771, 2
        %v773 = vmin.f32 %v771, %v772
        %v774 = vrot.slane %v773, 1
        %v775 = vmin.f32 %v773, %v774
        %v776 = vsel %vm665, %v756, inf
        %v777 = vrot.slane %v776, 4
        %v778 = vmin.f32 %v776, %v777
        %v779 = vrot.slane %v778, 2
        %v780 = vmin.f32 %v778, %v779
        %v781 = vrot.slane %v780, 1
        %v782 = vmin.f32 %v780, %v781
        %v783 = vsel %vm665, %v757, inf
        %v784 = vrot.slane %v783, 4
        %v785 = vmin.f32 %v783, %v784
        %v786 = vrot.slane %v785, 2
        %v787 = vmin.f32 %v785, %v786
        %v788 = vrot.slane %v787, 1
        %v789 = vmin.f32 %v787, %v788
        %v790 = vsel %vm665, %v758, inf
        %v791 = vrot.slane %v790, 4
        %v792 = vmin.f32 %v790, %v791
        %v793 = vrot.slane %v792, 2
        %v794 = vmin.f32 %v792, %v793
        %v795 = vrot.slane %v794, 1
        %v796 = vmin.f32 %v794, %v795
        %v797 = vsel %vm665, %v759, inf
        %v798 = vrot.slane %v797, 4
        %v799 = vmin.f32 %v797, %v798
        %v800 = vrot.slane %v799, 2
        %v801 = vmin.f32 %v799, %v800
        %v802 = vrot.slane %v801, 1
        %v803 = vmin.f32 %v801, %v802
        %v804 = vsel %vm665, %v760, inf
        %v805 = vrot.slane %v804, 4
        %v806 = vmin.f32 %v804, %v805
        %v807 = vrot.slane %v806, 2
        %v808 = vmin.f32 %v806, %v807
        %v809 = vrot.slane %v808, 1
        %v810 = vmin.f32 %v808, %v809
        %v811 = vsel %vm665, %v761, inf
        %v812 = vrot.slane %v811, 4
        %v813 = vmin.f32 %v811, %v812
        %v814 = vrot.slane %v813, 2
        %v815 = vmin.f32 %v813, %v814
        %v816 = vrot.slane %v815, 1
        %v817 = vmin.f32 %v815, %v816
        %v826 = vsel %vm730, %v775, %v768
        %v827 = vsel %vm732, %v782, %v826
        %v828 = vsel %vm734, %v789, %v827
        %v829 = vsel %vm736, %v796, %v828
        %v830 = vsel %vm738, %v803, %v829
        %v831 = vsel %vm740, %v810, %v830
        %v832 = vsel %vm742, %v817, %v831
        %834 = vst.msk [vmem:[%s587] sm:$0xff] %vm665, %v832
        %v835 = vld [vmem:[%s555] sm:$0xff]
        %v836 = vpack.c.bf16 %v835, %v835
        %v837 = vld [vmem:[%s5] sm:$0x3]
        %v838 = vld [vmem:[%s9] sm:$0x1]
        %v840 = vlaneseq
        %v841 = vshrl.u32 %v840, 7
        %v842 = vsub.s32 0, %v841
        %v843 = vrot.slane %v838, %v842
        %v846 = vsel %vm665, %v836, 0
        %vm848 = vcmask 1041408
        %v850 = vsel %vm848, %v837, 0
        %852 = vmatprep.subr.bf16.mxu0 0
        %853 = vmatpush1.bf16.msra.mxu0 %v850
        %854 = vmatprep.subr.bf16.mxu0 0
        %855 = vmatpush1.bf16.msra.mxu0 0
        %856 = vmatprep.subr.bf16.mxu0 0
        %857 = vmatpush1.bf16.msra.mxu0 0
        %858 = vmatprep.subr.bf16.mxu0 0
        %859 = vmatpush1.bf16.msra.mxu0 0
        %860 = vmatprep.subr.bf16.mxu0 0
        %861 = vmatpush1.bf16.msra.mxu0 0
        %862 = vmatprep.subr.bf16.mxu0 0
        %863 = vmatpush1.bf16.msra.mxu0 0
        %864 = vmatprep.subr.bf16.mxu0 0
        %865 = vmatpush1.bf16.msra.mxu0 0
        %866 = vmatprep.subr.bf16.mxu0 0
        %867 = vmatpush1.bf16.msra.mxu0 0
        %868 = vmatprep.subr.bf16.mxu0 0
        %869 = vmatpush1.bf16.msra.mxu0 0
        %870 = vmatprep.subr.bf16.mxu0 0
        %871 = vmatpush1.bf16.msra.mxu0 0
        %872 = vmatprep.subr.bf16.mxu0 0
        %873 = vmatpush1.bf16.msra.mxu0 0
        %874 = vmatprep.subr.bf16.mxu0 0
        %875 = vmatpush1.bf16.msra.mxu0 0
        %876 = vmatprep.subr.bf16.mxu0 0
        %877 = vmatpush1.bf16.msra.mxu0 0
        %878 = vmatprep.subr.bf16.mxu0 0
        %879 = vmatpush1.bf16.msra.mxu0 0
        %880 = vmatprep.subr.bf16.mxu0 0
        %881 = vmatpush1.bf16.msra.mxu0 0
        %882 = vmatprep.subr.bf16.mxu0 0
        %883 = vmatpush1.bf16.msra.mxu0 0
        %884 = vmatprep.mubr.bf16.mxu0 0
        %885 = vmatmul.mubr.bf16.gmra.mrb[0].mxu0 %v846
        %v886 = vpop.f32.mrb[0].mxu0
        %v887 = vadd.f32 %v843, %v886
        %v888 = vpop.f32.mrb[0].mxu0
        %v889 = vpop.f32.mrb[0].mxu0
        %v890 = vpop.f32.mrb[0].mxu0
        %891 = vdwg.mxu0
        %v892 = vld [vmem:[%s559] sm:$0xff]
        %v893 = vpack.c.bf16 %v892, %v892
        %v894 = vld [vmem:[%s7] sm:$0x3]
        %v896 = vsel %vm665, %v893, 0
        %v899 = vsel %vm848, %v894, 0
        %901 = vmatprep.subr.bf16.mxu0 0
        %902 = vmatpush1.bf16.msra.mxu0 %v899
        %903 = vmatprep.subr.bf16.mxu0 0
        %904 = vmatpush1.bf16.msra.mxu0 0
        %905 = vmatprep.subr.bf16.mxu0 0
        %906 = vmatpush1.bf16.msra.mxu0 0
        %907 = vmatprep.subr.bf16.mxu0 0
        %908 = vmatpush1.bf16.msra.mxu0 0
        %909 = vmatprep.subr.bf16.mxu0 0
        %910 = vmatpush1.bf16.msra.mxu0 0
        %911 = vmatprep.subr.bf16.mxu0 0
        %912 = vmatpush1.bf16.msra.mxu0 0
        %913 = vmatprep.subr.bf16.mxu0 0
        %914 = vmatpush1.bf16.msra.mxu0 0
        %915 = vmatprep.subr.bf16.mxu0 0
        %916 = vmatpush1.bf16.msra.mxu0 0
        %917 = vmatprep.subr.bf16.mxu0 0
        %918 = vmatpush1.bf16.msra.mxu0 0
        %919 = vmatprep.subr.bf16.mxu0 0
        %920 = vmatpush1.bf16.msra.mxu0 0
        %921 = vmatprep.subr.bf16.mxu0 0
        %922 = vmatpush1.bf16.msra.mxu0 0
        %923 = vmatprep.subr.bf16.mxu0 0
        %924 = vmatpush1.bf16.msra.mxu0 0
        %925 = vmatprep.subr.bf16.mxu0 0
        %926 = vmatpush1.bf16.msra.mxu0 0
        %927 = vmatprep.subr.bf16.mxu0 0
        %928 = vmatpush1.bf16.msra.mxu0 0
        %929 = vmatprep.subr.bf16.mxu0 0
        %930 = vmatpush1.bf16.msra.mxu0 0
        %931 = vmatprep.subr.bf16.mxu0 0
        %932 = vmatpush1.bf16.msra.mxu0 0
        %933 = vmatprep.mubr.bf16.mxu0 0
        %934 = vmatmul.mubr.bf16.gmra.mrb[0].mxu0 %v896
        %v935 = vpop.f32.mrb[0].mxu0
        %v936 = vadd.f32 0.0, %v935
        %v937 = vpop.f32.mrb[0].mxu0
        %v938 = vpop.f32.mrb[0].mxu0
        %v939 = vpop.f32.mrb[0].mxu0
        %940 = vdwg.mxu0
        %v941 = vpack.c.bf16 %v599, %v598
        %v942 = vpack.c.bf16 %v601, %v600
        %v943 = vpack.c.bf16 %v603, %v602
        %v944 = vpack.c.bf16 %v605, %v604
        %v945 = vld [vmem:[%s6] sm:$0x3]
        %v946 = vld [vmem:[%s578] sm:$0xf]
        %v947 = vld [vmem:[%s578 + $0x4] sm:$0xf]
        %v948 = vld [vmem:[%s578 + $0x8] sm:$0xf]
        %v949 = vld [vmem:[%s578 + $0xc] sm:$0xf]
        %v950 = vld [vmem:[%s578 + $0x10] sm:$0xf]
        %v951 = vld [vmem:[%s578 + $0x14] sm:$0xf]
        %v952 = vld [vmem:[%s578 + $0x18] sm:$0xf]
        %v953 = vld [vmem:[%s578 + $0x1c] sm:$0xf]
        %v954 = vld [vmem:[%s8] sm:$0x3]
        %v963 = vunpack.c.l.b16 %v946
        %v964 = vunpack.c.l.b16 %v947
        %v965 = vunpack.c.l.b16 %v948
        %v966 = vunpack.c.l.b16 %v949
        %v967 = vunpack.c.l.b16 %v950
        %v968 = vunpack.c.l.b16 %v951
        %v969 = vunpack.c.l.b16 %v952
        %v970 = vunpack.c.l.b16 %v953
        %v971 = vpack.c.b16 %v964, %v963
        %v972 = vpack.c.b16 %v966, %v965
        %v973 = vpack.c.b16 %v968, %v967
        %v974 = vpack.c.b16 %v970, %v969
        %v976 = vsel %vm665, %v971, 0
        %v979 = vsel %vm665, %v972, 0
        %v982 = vsel %vm665, %v973, 0
        %v985 = vsel %vm665, %v974, 0
        %v988 = vsel %vm848, %v954, 0
        %990 = vmatprep.subr.bf16.mxu0 0
        %991 = vmatpush1.bf16.msra.mxu0 %v988
        %992 = vmatprep.subr.bf16.mxu0 0
        %993 = vmatpush1.bf16.msra.mxu0 0
        %994 = vmatprep.subr.bf16.mxu0 0
        %995 = vmatpush1.bf16.msra.mxu0 0
        %996 = vmatprep.subr.bf16.mxu0 0
        %997 = vmatpush1.bf16.msra.mxu0 0
        %998 = vmatprep.subr.bf16.mxu0 0
        %999 = vmatpush1.bf16.msra.mxu0 0
        %1000 = vmatprep.subr.bf16.mxu0 0
        %1001 = vmatpush1.bf16.msra.mxu0 0
        %1002 = vmatprep.subr.bf16.mxu0 0
        %1003 = vmatpush1.bf16.msra.mxu0 0
        %1004 = vmatprep.subr.bf16.mxu0 0
        %1005 = vmatpush1.bf16.msra.mxu0 0
        %1006 = vmatprep.subr.bf16.mxu0 0
        %1007 = vmatpush1.bf16.msra.mxu0 0
        %1008 = vmatprep.subr.bf16.mxu0 0
        %1009 = vmatpush1.bf16.msra.mxu0 0
        %1010 = vmatprep.subr.bf16.mxu0 0
        %1011 = vmatpush1.bf16.msra.mxu0 0
        %1012 = vmatprep.subr.bf16.mxu0 0
        %1013 = vmatpush1.bf16.msra.mxu0 0
        %1014 = vmatprep.subr.bf16.mxu0 0
        %1015 = vmatpush1.bf16.msra.mxu0 0
        %1016 = vmatprep.subr.bf16.mxu0 0
        %1017 = vmatpush1.bf16.msra.mxu0 0
        %1018 = vmatprep.subr.bf16.mxu0 0
        %1019 = vmatpush1.bf16.msra.mxu0 0
        %1020 = vmatprep.subr.bf16.mxu0 0
        %1021 = vmatpush1.bf16.msra.mxu0 0
        %1022 = vmatprep.mubr.bf16.mxu0 0
        %1023 = vmatmul.mubr.bf16.gmra.mrb[0].mxu0 %v976
        %v1024 = vpop.f32.mrb[0].mxu0
        %v1025 = vadd.f32 0.0, %v1024
        %v1026 = vpop.f32.mrb[0].mxu0
        %v1027 = vpop.f32.mrb[0].mxu0
        %v1028 = vadd.f32 0.0, %v1027
        %v1029 = vpop.f32.mrb[0].mxu0
        %1030 = vmatprep.mubr.bf16.mxu0 0
        %1031 = vmatmul.mubr.bf16.gmra.mrb[0].mxu0 %v979
        %v1032 = vpop.f32.mrb[0].mxu0
        %v1033 = vadd.f32 0.0, %v1032
        %v1034 = vpop.f32.mrb[0].mxu0
        %v1035 = vpop.f32.mrb[0].mxu0
        %v1036 = vadd.f32 0.0, %v1035
        %v1037 = vpop.f32.mrb[0].mxu0
        %1038 = vmatprep.mubr.bf16.mxu0 0
        %1039 = vmatmul.mubr.bf16.gmra.mrb[0].mxu0 %v982
        %v1040 = vpop.f32.mrb[0].mxu0
        %v1041 = vadd.f32 0.0, %v1040
        %v1042 = vpop.f32.mrb[0].mxu0
        %v1043 = vpop.f32.mrb[0].mxu0
        %v1044 = vadd.f32 0.0, %v1043
        %v1045 = vpop.f32.mrb[0].mxu0
        %1046 = vmatprep.mubr.bf16.mxu0 0
        %1047 = vmatmul.mubr.bf16.gmra.mrb[0].mxu0 %v985
        %v1048 = vpop.f32.mrb[0].mxu0
        %v1049 = vadd.f32 0.0, %v1048
        %v1050 = vpop.f32.mrb[0].mxu0
        %v1051 = vpop.f32.mrb[0].mxu0
        %v1052 = vadd.f32 0.0, %v1051
        %v1053 = vpop.f32.mrb[0].mxu0
        %1054 = vdwg.mxu0
        %v1056 = vsel %vm665, %v941, 0
        %v1059 = vsel %vm665, %v942, 0
        %v1062 = vsel %vm665, %v943, 0
        %v1065 = vsel %vm665, %v944, 0
        %v1068 = vsel %vm848, %v945, 0
        %1070 = vmatprep.subr.bf16.mxu0 0
        %1071 = vmatpush1.bf16.msra.mxu0 %v1068
        %1072 = vmatprep.subr.bf16.mxu0 0
        %1073 = vmatpush1.bf16.msra.mxu0 0
        %1074 = vmatprep.subr.bf16.mxu0 0
        %1075 = vmatpush1.bf16.msra.mxu0 0
        %1076 = vmatprep.subr.bf16.mxu0 0
        %1077 = vmatpush1.bf16.msra.mxu0 0
        %1078 = vmatprep.subr.bf16.mxu0 0
        %1079 = vmatpush1.bf16.msra.mxu0 0
        %1080 = vmatprep.subr.bf16.mxu0 0
        %1081 = vmatpush1.bf16.msra.mxu0 0
        %1082 = vmatprep.subr.bf16.mxu0 0
        %1083 = vmatpush1.bf16.msra.mxu0 0
        %1084 = vmatprep.subr.bf16.mxu0 0
        %1085 = vmatpush1.bf16.msra.mxu0 0
        %1086 = vmatprep.subr.bf16.mxu0 0
        %1087 = vmatpush1.bf16.msra.mxu0 0
        %1088 = vmatprep.subr.bf16.mxu0 0
        %1089 = vmatpush1.bf16.msra.mxu0 0
        %1090 = vmatprep.subr.bf16.mxu0 0
        %1091 = vmatpush1.bf16.msra.mxu0 0
        %1092 = vmatprep.subr.bf16.mxu0 0
        %1093 = vmatpush1.bf16.msra.mxu0 0
        %1094 = vmatprep.subr.bf16.mxu0 0
        %1095 = vmatpush1.bf16.msra.mxu0 0
        %1096 = vmatprep.subr.bf16.mxu0 0
        %1097 = vmatpush1.bf16.msra.mxu0 0
        %1098 = vmatprep.subr.bf16.mxu0 0
        %1099 = vmatpush1.bf16.msra.mxu0 0
        %1100 = vmatprep.subr.bf16.mxu0 0
        %1101 = vmatpush1.bf16.msra.mxu0 0
        %1102 = vmatprep.mubr.bf16.mxu0 0
        %1103 = vmatmul.mubr.bf16.gmra.mrb[0].mxu0 %v1056
        %v1104 = vpop.f32.mrb[0].mxu0
        %v1105 = vadd.f32 %v1025, %v1104
        %v1106 = vpop.f32.mrb[0].mxu0
        %v1107 = vpop.f32.mrb[0].mxu0
        %v1108 = vadd.f32 %v1028, %v1107
        %v1109 = vpop.f32.mrb[0].mxu0
        %1110 = vmatprep.mubr.bf16.mxu0 0
        %1111 = vmatmul.mubr.bf16.gmra.mrb[0].mxu0 %v1059
        %v1112 = vpop.f32.mrb[0].mxu0
        %v1113 = vadd.f32 %v1033, %v1112
        %v1114 = vpop.f32.mrb[0].mxu0
        %v1115 = vpop.f32.mrb[0].mxu0
        %v1116 = vadd.f32 %v1036, %v1115
        %v1117 = vpop.f32.mrb[0].mxu0
        %1118 = vmatprep.mubr.bf16.mxu0 0
        %1119 = vmatmul.mubr.bf16.gmra.mrb[0].mxu0 %v1062
        %v1120 = vpop.f32.mrb[0].mxu0
        %v1121 = vadd.f32 %v1041, %v1120
        %v1122 = vpop.f32.mrb[0].mxu0
        %v1123 = vpop.f32.mrb[0].mxu0
        %v1124 = vadd.f32 %v1044, %v1123
        %v1125 = vpop.f32.mrb[0].mxu0
        %1126 = vmatprep.mubr.bf16.mxu0 0
        %1127 = vmatmul.mubr.bf16.gmra.mrb[0].mxu0 %v1065
        %v1128 = vpop.f32.mrb[0].mxu0
        %v1129 = vadd.f32 %v1049, %v1128
        %v1130 = vpop.f32.mrb[0].mxu0
        %v1131 = vpop.f32.mrb[0].mxu0
        %v1132 = vadd.f32 %v1052, %v1131
        %v1133 = vpop.f32.mrb[0].mxu0
        %1134 = vdwg.mxu0
        %v1136 = vcombine.high %v887, %v887
        %v1138 = vunpack.c.l.s4 1966171168
        %v1139 = vunpack.c.0.s8 %v1138
        %v1140 = vlaneseq
        %v1141 = vshrl.u32 %v1140, 7
        %v1142 = vsub.s32 %v1139, %v1141
        %v1143 = vrot.slane %v887, %v1142
        %v1145 = vunpack.c.l.s4 1966171168
        %v1146 = vunpack.c.0.s8 %v1145
        %v1147 = vlaneseq
        %v1148 = vshrl.u32 %v1147, 7
        %v1149 = vsub.s32 %v1146, %v1148
        %v1150 = vrot.slane %v1136, %v1149
        %v1151 = vcombine.high %v1143, %v1143
        %v1152 = vcombine.high %v1150, %v1150
        %v1154 = vunpack.c.l.s4 1966171168
        %v1155 = vunpack.c.0.s8 %v1154
        %v1156 = vlaneseq
        %v1157 = vshrl.u32 %v1156, 7
        %v1158 = vsub.s32 %v1155, %v1157
        %v1159 = vrot.slane %v1143, %v1158
        %v1161 = vunpack.c.l.s4 1966171168
        %v1162 = vunpack.c.0.s8 %v1161
        %v1163 = vlaneseq
        %v1164 = vshrl.u32 %v1163, 7
        %v1165 = vsub.s32 %v1162, %v1164
        %v1166 = vrot.slane %v1150, %v1165
        %v1168 = vunpack.c.l.s4 1966171168
        %v1169 = vunpack.c.0.s8 %v1168
        %v1170 = vlaneseq
        %v1171 = vshrl.u32 %v1170, 7
        %v1172 = vsub.s32 %v1169, %v1171
        %v1173 = vrot.slane %v1151, %v1172
        %v1175 = vunpack.c.l.s4 1966171168
        %v1176 = vunpack.c.0.s8 %v1175
        %v1177 = vlaneseq
        %v1178 = vshrl.u32 %v1177, 7
        %v1179 = vsub.s32 %v1176, %v1178
        %v1180 = vrot.slane %v1152, %v1179
        %v1181 = vcombine.high %v1159, %v1159
        %v1182 = vcombine.high %v1166, %v1166
        %v1183 = vcombine.high %v1173, %v1173
        %v1184 = vcombine.high %v1180, %v1180
        %v1185 = vlaneseq
        %v1186 = vshrl.u32 %v1185, 7
        %v1187 = vsub.s32 0, %v1186
        %v1188 = vrot.slane %v1159, %v1187
        %v1189 = vlaneseq
        %v1190 = vshrl.u32 %v1189, 7
        %v1191 = vsub.s32 0, %v1190
        %v1192 = vrot.slane %v1173, %v1191
        %v1193 = vlaneseq
        %v1194 = vshrl.u32 %v1193, 7
        %v1195 = vsub.s32 0, %v1194
        %v1196 = vrot.slane %v1181, %v1195
        %v1197 = vlaneseq
        %v1198 = vshrl.u32 %v1197, 7
        %v1199 = vsub.s32 0, %v1198
        %v1200 = vrot.slane %v1183, %v1199
        %v1201 = vlaneseq
        %v1202 = vshrl.u32 %v1201, 7
        %v1203 = vsub.s32 0, %v1202
        %v1204 = vrot.slane %v1166, %v1203
        %v1205 = vlaneseq
        %v1206 = vshrl.u32 %v1205, 7
        %v1207 = vsub.s32 0, %v1206
        %v1208 = vrot.slane %v1180, %v1207
        %v1209 = vlaneseq
        %v1210 = vshrl.u32 %v1209, 7
        %v1211 = vsub.s32 0, %v1210
        %v1212 = vrot.slane %v1182, %v1211
        %v1213 = vlaneseq
        %v1214 = vshrl.u32 %v1213, 7
        %v1215 = vsub.s32 0, %v1214
        %v1216 = vrot.slane %v1184, %v1215
        %v1225 = vadd.f32 %v1105, %v1188
        %v1226 = vadd.f32 %v1108, %v1192
        %v1227 = vadd.f32 %v1113, %v1196
        %v1228 = vadd.f32 %v1116, %v1200
        %v1229 = vadd.f32 %v1121, %v1204
        %v1230 = vadd.f32 %v1124, %v1208
        %v1231 = vadd.f32 %v1129, %v1212
        %v1232 = vadd.f32 %v1132, %v1216
        %v1233 = vadd.f32 %v1225, %v936
        %v1234 = vadd.f32 %v1226, %v936
        %v1235 = vadd.f32 %v1227, %v936
        %v1236 = vadd.f32 %v1228, %v936
        %v1237 = vadd.f32 %v1229, %v936
        %v1238 = vadd.f32 %v1230, %v936
        %v1239 = vadd.f32 %v1231, %v936
        %v1240 = vadd.f32 %v1232, %v936
        %v1241 = vxor.u32 %v1233, 2147483648
        %v1242 = vxor.u32 %v1234, 2147483648
        %v1243 = vxor.u32 %v1235, 2147483648
        %v1244 = vxor.u32 %v1236, 2147483648
        %v1245 = vxor.u32 %v1237, 2147483648
        %v1246 = vxor.u32 %v1238, 2147483648
        %v1247 = vxor.u32 %v1239, 2147483648
        %v1248 = vxor.u32 %v1240, 2147483648
        %v1249 = vmul.f32 %v1241, 1.442695
        %v1250 = vpow.pop %v1249
        %v1251 = vmul.f32 %v1242, 1.442695
        %v1252 = vpow.pop %v1251
        %v1253 = vmul.f32 %v1243, 1.442695
        %v1254 = vpow.pop %v1253
        %v1255 = vmul.f32 %v1244, 1.442695
        %v1256 = vpow.pop %v1255
        %v1257 = vmul.f32 %v1245, 1.442695
        %v1258 = vpow.pop %v1257
        %v1259 = vmul.f32 %v1246, 1.442695
        %v1260 = vpow.pop %v1259
        %v1261 = vmul.f32 %v1247, 1.442695
        %v1262 = vpow.pop %v1261
        %v1263 = vmul.f32 %v1248, 1.442695
        %v1264 = vpow.pop %v1263
        %v1265 = vadd.f32 %v1250, 1.0
        %v1266 = vadd.f32 %v1252, 1.0
        %v1267 = vadd.f32 %v1254, 1.0
        %v1268 = vadd.f32 %v1256, 1.0
        %v1269 = vadd.f32 %v1258, 1.0
        %v1270 = vadd.f32 %v1260, 1.0
        %v1271 = vadd.f32 %v1262, 1.0
        %v1272 = vadd.f32 %v1264, 1.0
        %v1273 = vrcp.pop %v1265
        %v1274 = vmul.f32 1.0, %v1273
        %v1275 = vrcp.pop %v1266
        %v1276 = vmul.f32 1.0, %v1275
        %v1277 = vrcp.pop %v1267
        %v1278 = vmul.f32 1.0, %v1277
        %v1279 = vrcp.pop %v1268
        %v1280 = vmul.f32 1.0, %v1279
        %v1281 = vrcp.pop %v1269
        %v1282 = vmul.f32 1.0, %v1281
        %v1283 = vrcp.pop %v1270
        %v1284 = vmul.f32 1.0, %v1283
        %v1285 = vrcp.pop %v1271
        %v1286 = vmul.f32 1.0, %v1285
        %v1287 = vrcp.pop %v1272
        %v1288 = vmul.f32 1.0, %v1287
        %v1289 = vpack.c.bf16 %v1276, %v1274
        %v1290 = vpack.c.bf16 %v1280, %v1278
        %v1291 = vpack.c.bf16 %v1284, %v1282
        %v1292 = vpack.c.bf16 %v1288, %v1286
        %v1293 = vld [vmem:[%s10] sm:$0xf]
        %v1294 = vld [vmem:[%s10 + $0x4] sm:$0xf]
        %v1295 = vld [vmem:[%s11] sm:$0x1]
        %v1297 = vlaneseq
        %v1298 = vshrl.u32 %v1297, 7
        %v1299 = vsub.s32 0, %v1298
        %v1300 = vrot.slane %v1295, %v1299
        %v1304 = vunpack.c.l.b16 %v1293
        %v1305 = vunpack.c.l.b16 %v1294
        %v1306 = vpack.c.b16 %v1305, %v1304
        %vm1308 = vcmask 130048
        %v1310 = vsel %vm1308, %v1289, 0
        %v1313 = vsel %vm1308, %v1290, 0
        %v1316 = vsel %vm1308, %v1291, 0
        %v1319 = vsel %vm1308, %v1292, 0
        %1321 = vmatprep.subr.bf16.mxu0 0
        %1322 = vmatpush1.bf16.msra.mxu0 %v1306
        %1323 = vmatprep.subr.bf16.mxu0 0
        %1324 = vmatpush1.bf16.msra.mxu0 0
        %1325 = vmatprep.subr.bf16.mxu0 0
        %1326 = vmatpush1.bf16.msra.mxu0 0
        %1327 = vmatprep.subr.bf16.mxu0 0
        %1328 = vmatpush1.bf16.msra.mxu0 0
        %1329 = vmatprep.subr.bf16.mxu0 0
        %1330 = vmatpush1.bf16.msra.mxu0 0
        %1331 = vmatprep.subr.bf16.mxu0 0
        %1332 = vmatpush1.bf16.msra.mxu0 0
        %1333 = vmatprep.subr.bf16.mxu0 0
        %1334 = vmatpush1.bf16.msra.mxu0 0
        %1335 = vmatprep.subr.bf16.mxu0 0
        %1336 = vmatpush1.bf16.msra.mxu0 0
        %1337 = vmatprep.subr.bf16.mxu0 0
        %1338 = vmatpush1.bf16.msra.mxu0 0
        %1339 = vmatprep.subr.bf16.mxu0 0
        %1340 = vmatpush1.bf16.msra.mxu0 0
        %1341 = vmatprep.subr.bf16.mxu0 0
        %1342 = vmatpush1.bf16.msra.mxu0 0
        %1343 = vmatprep.subr.bf16.mxu0 0
        %1344 = vmatpush1.bf16.msra.mxu0 0
        %1345 = vmatprep.subr.bf16.mxu0 0
        %1346 = vmatpush1.bf16.msra.mxu0 0
        %1347 = vmatprep.subr.bf16.mxu0 0
        %1348 = vmatpush1.bf16.msra.mxu0 0
        %1349 = vmatprep.subr.bf16.mxu0 0
        %1350 = vmatpush1.bf16.msra.mxu0 0
        %1351 = vmatprep.subr.bf16.mxu0 0
        %1352 = vmatpush1.bf16.msra.mxu0 0
        %1353 = vmatprep.mubr.bf16.mxu0 0
        %1354 = vmatmul.mubr.bf16.gmra.mrb[0].mxu0 %v1310
        %v1355 = vpop.f32.mrb[0].mxu0
        %v1356 = vadd.f32 %v1300, %v1355
        %v1357 = vpop.f32.mrb[0].mxu0
        %v1358 = vpop.f32.mrb[0].mxu0
        %v1359 = vadd.f32 %v1300, %v1358
        %v1360 = vpop.f32.mrb[0].mxu0
        %1361 = vmatprep.mubr.bf16.mxu0 0
        %1362 = vmatmul.mubr.bf16.gmra.mrb[0].mxu0 %v1313
        %v1363 = vpop.f32.mrb[0].mxu0
        %v1364 = vadd.f32 %v1300, %v1363
        %v1365 = vpop.f32.mrb[0].mxu0
        %v1366 = vpop.f32.mrb[0].mxu0
        %v1367 = vadd.f32 %v1300, %v1366
        %v1368 = vpop.f32.mrb[0].mxu0
        %1369 = vmatprep.mubr.bf16.mxu0 0
        %1370 = vmatmul.mubr.bf16.gmra.mrb[0].mxu0 %v1316
        %v1371 = vpop.f32.mrb[0].mxu0
        %v1372 = vadd.f32 %v1300, %v1371
        %v1373 = vpop.f32.mrb[0].mxu0
        %v1374 = vpop.f32.mrb[0].mxu0
        %v1375 = vadd.f32 %v1300, %v1374
        %v1376 = vpop.f32.mrb[0].mxu0
        %1377 = vmatprep.mubr.bf16.mxu0 0
        %1378 = vmatmul.mubr.bf16.gmra.mrb[0].mxu0 %v1319
        %v1379 = vpop.f32.mrb[0].mxu0
        %v1380 = vadd.f32 %v1300, %v1379
        %v1381 = vpop.f32.mrb[0].mxu0
        %v1382 = vpop.f32.mrb[0].mxu0
        %v1383 = vadd.f32 %v1300, %v1382
        %v1384 = vpop.f32.mrb[0].mxu0
        %1385 = vdwg.mxu0
        %v1386 = vxor.u32 %v1356, 2147483648
        %v1387 = vxor.u32 %v1359, 2147483648
        %v1388 = vxor.u32 %v1364, 2147483648
        %v1389 = vxor.u32 %v1367, 2147483648
        %v1390 = vxor.u32 %v1372, 2147483648
        %v1391 = vxor.u32 %v1375, 2147483648
        %v1392 = vxor.u32 %v1380, 2147483648
        %v1393 = vxor.u32 %v1383, 2147483648
        %v1394 = vmul.f32 %v1386, 1.442695
        %v1395 = vpow.pop %v1394
        %v1396 = vmul.f32 %v1387, 1.442695
        %v1397 = vpow.pop %v1396
        %v1398 = vmul.f32 %v1388, 1.442695
        %v1399 = vpow.pop %v1398
        %v1400 = vmul.f32 %v1389, 1.442695
        %v1401 = vpow.pop %v1400
        %v1402 = vmul.f32 %v1390, 1.442695
        %v1403 = vpow.pop %v1402
        %v1404 = vmul.f32 %v1391, 1.442695
        %v1405 = vpow.pop %v1404
        %v1406 = vmul.f32 %v1392, 1.442695
        %v1407 = vpow.pop %v1406
        %v1408 = vmul.f32 %v1393, 1.442695
        %v1409 = vpow.pop %v1408
        %v1410 = vadd.f32 %v1395, 1.0
        %v1411 = vadd.f32 %v1397, 1.0
        %v1412 = vadd.f32 %v1399, 1.0
        %v1413 = vadd.f32 %v1401, 1.0
        %v1414 = vadd.f32 %v1403, 1.0
        %v1415 = vadd.f32 %v1405, 1.0
        %v1416 = vadd.f32 %v1407, 1.0
        %v1417 = vadd.f32 %v1409, 1.0
        %v1418 = vrcp.pop %v1410
        %v1419 = vmul.f32 1.0, %v1418
        %v1420 = vrcp.pop %v1411
        %v1421 = vmul.f32 1.0, %v1420
        %v1422 = vrcp.pop %v1412
        %v1423 = vmul.f32 1.0, %v1422
        %v1424 = vrcp.pop %v1413
        %v1425 = vmul.f32 1.0, %v1424
        %v1426 = vrcp.pop %v1414
        %v1427 = vmul.f32 1.0, %v1426
        %v1428 = vrcp.pop %v1415
        %v1429 = vmul.f32 1.0, %v1428
        %v1430 = vrcp.pop %v1416
        %v1431 = vmul.f32 1.0, %v1430
        %v1432 = vrcp.pop %v1417
        %v1433 = vmul.f32 1.0, %v1432
        %1442 = vrot.lane.b32.xlu0 %v1419, 4
        %v1443 = vpop.permute.xlu0 %1442
        %1444 = vrot.lane.b32.xlu0 %v1421, 4
        %v1445 = vpop.permute.xlu0 %1444
        %1446 = vrot.lane.b32.xlu0 %v1423, 4
        %v1447 = vpop.permute.xlu0 %1446
        %1448 = vrot.lane.b32.xlu0 %v1425, 4
        %v1449 = vpop.permute.xlu0 %1448
        %1450 = vrot.lane.b32.xlu0 %v1427, 4
        %v1451 = vpop.permute.xlu0 %1450
        %1452 = vrot.lane.b32.xlu0 %v1429, 4
        %v1453 = vpop.permute.xlu0 %1452
        %1454 = vrot.lane.b32.xlu0 %v1431, 4
        %v1455 = vpop.permute.xlu0 %1454
        %1456 = vrot.lane.b32.xlu0 %v1433, 4
        %v1457 = vpop.permute.xlu0 %1456
        %v1466 = vsel %vm665, %v598, %v1443
        %v1467 = vsel %vm665, %v599, %v1445
        %v1468 = vsel %vm665, %v600, %v1447
        %v1469 = vsel %vm665, %v601, %v1449
        %v1470 = vsel %vm665, %v602, %v1451
        %v1471 = vsel %vm665, %v603, %v1453
        %v1472 = vsel %vm665, %v604, %v1455
        %v1473 = vsel %vm665, %v605, %v1457
        %vm1474 = vcmask 64512
        %1475 = vst.msk [vmem:[%s530] sm:$0xff] %vm1474, %v1466
        %1476 = vst.msk [vmem:[%s530 + $0x8] sm:$0xff] %vm1474, %v1467
        %1477 = vst.msk [vmem:[%s530 + $0x10] sm:$0xff] %vm1474, %v1468
        %1478 = vst.msk [vmem:[%s530 + $0x18] sm:$0xff] %vm1474, %v1469
        %1479 = vst.msk [vmem:[%s530 + $0x20] sm:$0xff] %vm1474, %v1470
        %1480 = vst.msk [vmem:[%s530 + $0x28] sm:$0xff] %vm1474, %v1471
        %1481 = vst.msk [vmem:[%s530 + $0x30] sm:$0xff] %vm1474, %v1472
        %1482 = vst.msk [vmem:[%s530 + $0x38] sm:$0xff] %vm1474, %v1473
        %s1483 = sand.u32 %s314, 1
        %s1484 = scalar_lea.sflag [#allocation5], %s1483
        %s1485 = sand.u32 %s314, 1
        %s1486 = smul.addr %s1485, 64
        %s1487 = scalar_lea.vmem [#allocation4], %s1486
        %p1488 = scmp.lt.s32.totalorder %s39, 1
        %s1489 = scalar_select %p1488, %s39, 1
        %p1490 = scmp.lt.s32.totalorder %s40, 0
        %s1491 = scalar_select %p1490, %s40, 0
        %s1492 = sadd.s32 %s1491, %s1489
        %s1493 = smul.addr %s1492, 8
        %s1494 = scalar_lea.vmem %s13, %s1493
        %p1495 = scmp.lt.s32.totalorder %s39, 1
        %s1496 = scalar_select %p1495, %s39, 1
        %p1497 = scmp.lt.s32.totalorder %s40, 0
        %s1498 = scalar_select %p1497, %s40, 0
        %s1499 = sadd.s32 %s1498, %s1496
        %s1500 = smul.addr %s1499, 8
        %s1501 = scalar_lea.vmem %s14, %s1500
        // Predicated region
        $region65: #{nlm_layer_forward.1} parent=63 // pred_check
          %p1502 = pneg %p324
        $region66: #{nlm_layer_forward.1} parent=63 // pred_check_branch
          %1504 = sbr.rel (%p1502) target = $region68
        $region67: #{nlm_layer_forward.1} parent=63 // pred_region
          %s1505 = smul.u32 8, %s40
          %s1507 = ssub.s32 1024, 1024
          %1508 = vsyncadd %s1484, %s1507
          %s1509 = smul.addr %s39, 8
          %s1510 = sadd.s32 %s1505, %s1509
          %s1511 = smul.addr %s1510, 128
          %s1512 = scalar_lea.hbm %s12, %s1511
          %s1513 = sshll.u32 %s1487, 4
          %s1514 = int_to_ptr.vmem [resolvable:$true] %s1513
          %1519 = dma.vmem_to_hbm [thread:$0]  %s1514, 1024, %s1512, %s1484, 128, 128, 8
        $region68: #{nlm_layer_forward.1} parent=63 // pred_fallthru
          _
        // Predicated region
        $region69: #{nlm_layer_forward.1} parent=63 // pred_check
          %p1520 = pneg %p352
        $region70: #{nlm_layer_forward.1} parent=63 // pred_check_branch
          %1522 = sbr.rel (%p1520) target = $region72
        $region71: #{nlm_layer_forward.1} parent=63 // pred_region
          _
        $region72: #{nlm_layer_forward.1} parent=63 // pred_fallthru
          _
        // Predicated region
        $region73: #{nlm_layer_forward.1} parent=63 // pred_check
          %p1523 = pneg %p380
        $region74: #{nlm_layer_forward.1} parent=63 // pred_check_branch
          %1525 = sbr.rel (%p1523) target = $region76
        $region75: #{nlm_layer_forward.1} parent=63 // pred_region
          _
        $region76: #{nlm_layer_forward.1} parent=63 // pred_fallthru
          _
      $region64: #{nlm_layer_forward.1} parent=5 // pred_fallthru
        _
      %p1526 = scmp.le.s32.totalorder 2, %s30
      // Predicated region
      $region77: #{nlm_layer_forward.1} parent=5 // pred_check
        %p1527 = pneg %p1526
      $region78: #{nlm_layer_forward.1} parent=5 // pred_check_branch
        %1529 = sbr.rel (%p1527) target = $region80
      $region79: #{nlm_layer_forward.1} parent=5 // pred_region
        %s1530 = ssub.s32 %s30, 2
        // Predicated region
        $region81: #{nlm_layer_forward.1} parent=79 // pred_check
          %p1531 = pneg %p330
        $region82: #{nlm_layer_forward.1} parent=79 // pred_check_branch
          %1533 = sbr.rel (%p1531) target = $region84
        $region83: #{nlm_layer_forward.1} parent=79 // pred_region
          %s1534 = sand.u32 %s315, 1
          %s1535 = scalar_lea.sflag [#allocation5], %s1534
          %s1536 = sand.u32 %s315, 1
          %s1537 = smul.addr %s1536, 64
          %s1538 = scalar_lea.vmem [#allocation4], %s1537
          %1539 = dma.done %s1535, 1024
        $region84: #{nlm_layer_forward.1} parent=79 // pred_fallthru
          _
        // Predicated region
        $region85: #{nlm_layer_forward.1} parent=79 // pred_check
          %p1540 = pneg %p358
        $region86: #{nlm_layer_forward.1} parent=79 // pred_check_branch
          %1542 = sbr.rel (%p1540) target = $region88
        $region87: #{nlm_layer_forward.1} parent=79 // pred_region
          %p1543 = scmp.lt.s32.totalorder %s41, 1
          %s1544 = scalar_select %p1543, %s41, 1
          %p1545 = scmp.lt.s32.totalorder %s42, 0
          %s1546 = scalar_select %p1545, %s42, 0
          %s1547 = sadd.s32 %s1546, %s1544
          %s1548 = smul.addr %s1547, 8
          %s1549 = scalar_lea.vmem %s13, %s1548
        $region88: #{nlm_layer_forward.1} parent=79 // pred_fallthru
          _
        // Predicated region
        $region89: #{nlm_layer_forward.1} parent=79 // pred_check
          %p1550 = pneg %p386
        $region90: #{nlm_layer_forward.1} parent=79 // pred_check_branch
          %1552 = sbr.rel (%p1550) target = $region92
        $region91: #{nlm_layer_forward.1} parent=79 // pred_region
          %p1553 = scmp.lt.s32.totalorder %s41, 1
          %s1554 = scalar_select %p1553, %s41, 1
          %p1555 = scmp.lt.s32.totalorder %s42, 0
          %s1556 = scalar_select %p1555, %s42, 0
          %s1557 = sadd.s32 %s1556, %s1554
          %s1558 = smul.addr %s1557, 8
          %s1559 = scalar_lea.vmem %s14, %s1558
        $region92: #{nlm_layer_forward.1} parent=79 // pred_fallthru
          _
      $region80: #{nlm_layer_forward.1} parent=5 // pred_fallthru
        _
    $region6: #{nlm_layer_forward.1} parent=1 // loop_footer
      %s34 = sadd.s32 1, %s30
    $region7: #{nlm_layer_forward.1} parent=1 // loop_footer_branch
      %29 = sbr.rel target = $region3
    $region8: #{nlm_layer_forward.1} parent=1 // loop_exit
      _
    %1560 = vsyncpa [#allocation5], 1
    %s1561 = scalar_lea.sflag [#allocation5], 1
    %1562 = vsyncpa %s1561, 1

</llo_original>
